<compile_context>
chip_gen: v5e
topology: v5e:2x2
jax: 0.10.0
libtpu: 0.0.40
codegen_flags: <defaults>
</compile_context>

<pallas_src>
import jax
import jax.numpy as jnp
from jax.experimental import pallas as pl
from jax.experimental.pallas import tpu as pltpu


def lstm_kernel(x_ref, w0_ref, whh_ref, wih_ref, b_ref, fcw_ref, fcb_ref,
                out_ref):
    """x_ref:   (T*B, F)      time-major, batch-flattened input
       w0_ref:  (F, 4H)       layer-0 input weights (pre-transposed)
       whh_ref: (L, H, 4H)    recurrent weights, all layers (pre-transposed)
       wih_ref: (L-1, H, 4H)  upper-layer input weights (pre-transposed)
       b_ref:   (L, 1, 4H)    combined b_ih + b_hh per layer
       fcw_ref: (1, H)        fc weight row
       fcb_ref: (1, 1)        fc bias
       out_ref: (B, 1)"""
    TB, F = x_ref.shape
    L, H, H4 = whh_ref.shape
    B = out_ref.shape[0]
    T = TB // B

    def sigmoid(z):
        # Single tanh EUP push on every generation (v5e-safe).
        return 0.5 * jnp.tanh(0.5 * z) + 0.5

    def cell(gates, c_prev):
        # Two full-slab (B,4H) transcendentals; lane slices pick [i, f, g, o].
        sig = sigmoid(gates)                     # i | f | . | o
        tnh = jnp.tanh(gates)                    # . | . | g | .
        i_g = sig[:, 0:H]
        f_g = sig[:, H:2 * H]
        g_g = tnh[:, 2 * H:3 * H]
        o_g = sig[:, 3 * H:4 * H]
        c_new = f_g * c_prev + i_g * g_g
        h_new = o_g * jnp.tanh(c_new)
        return h_new, c_new

    # --- Hoist loop-invariant weight / bias loads out of the recurrence -----
    w0 = w0_ref[...]                                            # (F, 4H)
    whh = [whh_ref[l] for l in range(L)]                        # (H, 4H) each
    wih = [wih_ref[l] for l in range(L - 1)]                    # (H, 4H) each
    b0 = b_ref[0]                                               # (1, 4H)
    b_up = [jnp.broadcast_to(b_ref[l], (B, H4)) for l in range(1, L)]
    fcw = fcw_ref[...]                                          # (1, H)
    fcb = fcb_ref[...]                                          # (1, 1)

    # --- Layer-0 input projection (+ bias) for ALL timesteps in ONE op ------
    x_all = x_ref[...]                                          # (T*B, F)
    if F == 1:
        g0_all = x_all * w0 + b0                                # broadcast mul
    else:
        g0_all = jnp.dot(x_all, w0,
                         preferred_element_type=jnp.float32) + b0

    # --- Recurrence: h/c/rec carried in vregs, time loop fully unrolled -----
    zeros_h = jnp.zeros((B, H), jnp.float32)    # h0 = c0 = 0, like PyTorch
    zeros_g = jnp.zeros((B, H4), jnp.float32)
    h = [zeros_h] * L
    c = [zeros_h] * L
    rec = [zeros_g] * L                         # rec[l] = h_t[l] @ W_hh[l]

    for t in range(T):
        # Layer 0: precomputed input projection + previously-issued recurrent
        # contribution (only the VPU add is on the wait-for-input chain).
        gates = g0_all[t * B:(t + 1) * B, :] + rec[0]
        h[0], c[0] = cell(gates, c[0])
        if t + 1 < T:
            rec[0] = jnp.dot(h[0], whh[0], preferred_element_type=jnp.float32)

        # Layers 1..L-1: split dots — only h[l-1] @ W_ih waits on the layer
        # below; the recurrent half was issued right after h[l] last step.
        for l in range(1, L):
            gates = (jnp.dot(h[l - 1], wih[l - 1],
                             preferred_element_type=jnp.float32)
                     + rec[l] + b_up[l - 1])
            h[l], c[l] = cell(gates, c[l])
            if t + 1 < T:
                rec[l] = jnp.dot(h[l], whh[l],
                                 preferred_element_type=jnp.float32)

    # --- fc(lstm_out[:, -1, :]): N=1 output -> VPU mul + lane reduce --------
    out_ref[...] = (jnp.sum(h[L - 1] * fcw, axis=-1, keepdims=True) + fcb)


def ecommerce_lstm_forward(x, params):
    """x: (B, T, F) float32, batch_first (like nn.LSTM(batch_first=True)).
    Returns (B,) — matches `self.fc(lstm_out[:, -1, :]).squeeze()`."""
    B, T, F = x.shape
    L, H, _ = params["whh"].shape
    # Layout plumbing only: time-major, batch-flattened so the kernel's
    # layer-0 projection is a single slab op and per-t views are
    # sublane-aligned static slices.
    x_tm = jnp.transpose(x, (1, 0, 2)).astype(jnp.float32)      # (T, B, F)
    x2d = x_tm.reshape(T * B, F)
    fcw_row = params["fcw"].T                                   # (1, H)

    out = pl.pallas_call(
        lstm_kernel,
        out_shape=jax.ShapeDtypeStruct((B, 1), jnp.float32),
        in_specs=[pl.BlockSpec(memory_space=pltpu.MemorySpace.VMEM)] * 7,
        out_specs=pl.BlockSpec(memory_space=pltpu.MemorySpace.VMEM),
    )(x2d, params["w0"], params["whh"], params["wih"], params["b"],
      fcw_row, params["fcb"])
    return out[:, 0]


def init_params(key, input_features=1, hidden_units=32, num_layers=3):
    """Deterministic init matching the PyTorch parameter shapes
    (uniform(-1/sqrt(H), 1/sqrt(H)), like nn.LSTM / nn.Linear defaults)."""
    H, L, F = hidden_units, num_layers, input_features
    k = 1.0 / jnp.sqrt(jnp.float32(H))
    keys = jax.random.split(key, 4 * L + 2)

    def u(kk, shape):
        return jax.random.uniform(kk, shape, jnp.float32, -k, k)

    # Layer 0 input weights: PyTorch weight_ih_l0 is (4H, F); store transposed.
    w0 = u(keys[0], (F, 4 * H))
    # Layers 1..L-1 input weights (4H, H) -> stored (L-1, H, 4H).
    wih = jnp.stack([u(keys[1 + l], (H, 4 * H)) for l in range(L - 1)], 0)
    # Recurrent weights (4H, H) -> stored (L, H, 4H).
    whh = jnp.stack([u(keys[L + l], (H, 4 * H)) for l in range(L)], 0)
    # Combined biases b_ih + b_hh per layer -> (L, 1, 4H).
    b = jnp.stack([(u(keys[2 * L + l], (1, 4 * H))
                    + u(keys[3 * L + l], (1, 4 * H))) for l in range(L)], 0)
    # fc: weight (1, H) stored as (H, 1); bias (1,) stored as (1, 1).
    fcw = u(keys[4 * L], (H, 1))
    fcb = u(keys[4 * L + 1], (1, 1))
    return {"w0": w0, "wih": wih, "whh": whh, "b": b, "fcw": fcw, "fcb": fcb}


def reference_forward(x, params):
    """Pure-JAX reference for correctness checking."""
    B, T, F = x.shape
    L, H, _ = params["whh"].shape
    h = jnp.zeros((L, B, H), jnp.float32)
    c = jnp.zeros((L, B, H), jnp.float32)
    for t in range(T):
        inp = x[:, t, :]
        for l in range(L):
            w_in = params["w0"] if l == 0 else params["wih"][l - 1]
            gates = inp @ w_in + h[l] @ params["whh"][l] + params["b"][l]
            i_g = jax.nn.sigmoid(gates[:, 0:H])
            f_g = jax.nn.sigmoid(gates[:, H:2 * H])
            g_g = jnp.tanh(gates[:, 2 * H:3 * H])
            o_g = jax.nn.sigmoid(gates[:, 3 * H:4 * H])
            c_new = f_g * c[l] + i_g * g_g
            h_new = o_g * jnp.tanh(c_new)
            c = c.at[l].set(c_new)
            h = h.at[l].set(h_new)
            inp = h_new
    return (h[L - 1] @ params["fcw"] + params["fcb"])[:, 0]


if __name__ == "__main__":
    B, T, F, H, L = 8, 8, 1, 32, 3
    key = jax.random.PRNGKey(0)
    kx, kp = jax.random.split(key)
    x = jax.random.normal(kx, (B, T, F), jnp.float32)
    params = init_params(kp, input_features=F, hidden_units=H, num_layers=L)

    out = jax.block_until_ready(ecommerce_lstm_forward(x, params))
    ref = reference_forward(x, params)

    assert out.shape == (B,), out.shape
    assert jnp.allclose(out, ref, atol=1e-4, rtol=1e-4), (out, ref)
    print("KERNEL_OK")
</pallas_src>

<mosaic_0001>
module attributes {stable_mosaic.version = 11 : i64} {
  func.func @lstm_kernel(%arg0: memref<64x1xf32, #tpu.memory_space<vmem>>, %arg1: memref<1x128xf32, #tpu.memory_space<vmem>>, %arg2: memref<3x32x128xf32, #tpu.memory_space<vmem>>, %arg3: memref<2x32x128xf32, #tpu.memory_space<vmem>>, %arg4: memref<3x1x128xf32, #tpu.memory_space<vmem>>, %arg5: memref<1x32xf32, #tpu.memory_space<vmem>>, %arg6: memref<1x1xf32, #tpu.memory_space<vmem>>, %arg7: memref<8x1xf32, #tpu.memory_space<vmem>>) attributes {dimension_semantics = [], scalar_prefetch = 0 : i64, scratch_operands = 0 : i64, tpu.core_type = #tpu.core_type<tc>} {
    %c0 = arith.constant 0 : index
    %c0_0 = arith.constant 0 : index
    %0 = vector.load %arg1[%c0, %c0_0] : memref<1x128xf32, #tpu.memory_space<vmem>>, vector<1x128xf32>
    %c0_1 = arith.constant 0 : index
    %c0_2 = arith.constant 0 : index
    %c0_3 = arith.constant 0 : index
    %1 = vector.load %arg2[%c0_1, %c0_2, %c0_3] : memref<3x32x128xf32, #tpu.memory_space<vmem>>, vector<1x32x128xf32>
    %2 = vector.shape_cast %1 : vector<1x32x128xf32> to vector<32x128xf32>
    %c1 = arith.constant 1 : index
    %c0_4 = arith.constant 0 : index
    %c0_5 = arith.constant 0 : index
    %3 = vector.load %arg2[%c1, %c0_4, %c0_5] : memref<3x32x128xf32, #tpu.memory_space<vmem>>, vector<1x32x128xf32>
    %4 = vector.shape_cast %3 : vector<1x32x128xf32> to vector<32x128xf32>
    %c2 = arith.constant 2 : index
    %c0_6 = arith.constant 0 : index
    %c0_7 = arith.constant 0 : index
    %5 = vector.load %arg2[%c2, %c0_6, %c0_7] : memref<3x32x128xf32, #tpu.memory_space<vmem>>, vector<1x32x128xf32>
    %6 = vector.shape_cast %5 : vector<1x32x128xf32> to vector<32x128xf32>
    %c0_8 = arith.constant 0 : index
    %c0_9 = arith.constant 0 : index
    %c0_10 = arith.constant 0 : index
    %7 = vector.load %arg3[%c0_8, %c0_9, %c0_10] : memref<2x32x128xf32, #tpu.memory_space<vmem>>, vector<1x32x128xf32>
    %8 = vector.shape_cast %7 : vector<1x32x128xf32> to vector<32x128xf32>
    %c1_11 = arith.constant 1 : index
    %c0_12 = arith.constant 0 : index
    %c0_13 = arith.constant 0 : index
    %9 = vector.load %arg3[%c1_11, %c0_12, %c0_13] : memref<2x32x128xf32, #tpu.memory_space<vmem>>, vector<1x32x128xf32>
    %10 = vector.shape_cast %9 : vector<1x32x128xf32> to vector<32x128xf32>
    %c0_14 = arith.constant 0 : index
    %c0_15 = arith.constant 0 : index
    %c0_16 = arith.constant 0 : index
    %11 = vector.load %arg4[%c0_14, %c0_15, %c0_16] : memref<3x1x128xf32, #tpu.memory_space<vmem>>, vector<1x1x128xf32>
    %12 = vector.shape_cast %11 : vector<1x1x128xf32> to vector<1x128xf32>
    %c1_17 = arith.constant 1 : index
    %c0_18 = arith.constant 0 : index
    %c0_19 = arith.constant 0 : index
    %13 = vector.load %arg4[%c1_17, %c0_18, %c0_19] : memref<3x1x128xf32, #tpu.memory_space<vmem>>, vector<1x1x128xf32>
    %14 = vector.shape_cast %13 : vector<1x1x128xf32> to vector<1x128xf32>
    %15 = vector.shape_cast %14 : vector<1x128xf32> to vector<1x128xf32>
    %16 = vector.broadcast %15 : vector<1x128xf32> to vector<8x128xf32>
    %c2_20 = arith.constant 2 : index
    %c0_21 = arith.constant 0 : index
    %c0_22 = arith.constant 0 : index
    %17 = vector.load %arg4[%c2_20, %c0_21, %c0_22] : memref<3x1x128xf32, #tpu.memory_space<vmem>>, vector<1x1x128xf32>
    %18 = vector.shape_cast %17 : vector<1x1x128xf32> to vector<1x128xf32>
    %19 = vector.shape_cast %18 : vector<1x128xf32> to vector<1x128xf32>
    %20 = vector.broadcast %19 : vector<1x128xf32> to vector<8x128xf32>
    %c0_23 = arith.constant 0 : index
    %c0_24 = arith.constant 0 : index
    %21 = vector.load %arg5[%c0_23, %c0_24] : memref<1x32xf32, #tpu.memory_space<vmem>>, vector<1x32xf32>
    %c0_25 = arith.constant 0 : index
    %c0_26 = arith.constant 0 : index
    %22 = vector.load %arg6[%c0_25, %c0_26] : memref<1x1xf32, #tpu.memory_space<vmem>>, vector<1x1xf32>
    %c0_27 = arith.constant 0 : index
    %c0_28 = arith.constant 0 : index
    %23 = vector.load %arg0[%c0_27, %c0_28] : memref<64x1xf32, #tpu.memory_space<vmem>>, vector<64x1xf32>
    %24 = vector.broadcast %23 : vector<64x1xf32> to vector<64x128xf32>
    %25 = vector.broadcast %0 : vector<1x128xf32> to vector<64x128xf32>
    %26 = arith.mulf %24, %25 : vector<64x128xf32>
    %27 = vector.broadcast %12 : vector<1x128xf32> to vector<64x128xf32>
    %28 = arith.addf %26, %27 : vector<64x128xf32>
    %cst = arith.constant 0.000000e+00 : f32
    %29 = vector.broadcast %cst : f32 to vector<8x32xf32>
    %cst_29 = arith.constant 0.000000e+00 : f32
    %30 = vector.broadcast %cst_29 : f32 to vector<8x128xf32>
    %31 = vector.extract_strided_slice %28 {offsets = [0, 0], sizes = [8, 128], strides = [1, 1]} : vector<64x128xf32> to vector<8x128xf32>
    %32 = arith.addf %31, %30 : vector<8x128xf32>
    %cst_30 = arith.constant 5.000000e-01 : f32
    %33 = vector.broadcast %cst_30 : f32 to vector<8x128xf32>
    %34 = arith.mulf %33, %32 : vector<8x128xf32>
    %35 = math.tanh %34 : vector<8x128xf32>
    %cst_31 = arith.constant 5.000000e-01 : f32
    %36 = vector.broadcast %cst_31 : f32 to vector<8x128xf32>
    %37 = arith.mulf %36, %35 : vector<8x128xf32>
    %cst_32 = arith.constant 5.000000e-01 : f32
    %38 = vector.broadcast %cst_32 : f32 to vector<8x128xf32>
    %39 = arith.addf %37, %38 : vector<8x128xf32>
    %40 = math.tanh %32 : vector<8x128xf32>
    %41 = vector.extract_strided_slice %39 {offsets = [0, 0], sizes = [8, 32], strides = [1, 1]} : vector<8x128xf32> to vector<8x32xf32>
    %42 = vector.extract_strided_slice %39 {offsets = [0, 32], sizes = [8, 32], strides = [1, 1]} : vector<8x128xf32> to vector<8x32xf32>
    %43 = vector.extract_strided_slice %40 {offsets = [0, 64], sizes = [8, 32], strides = [1, 1]} : vector<8x128xf32> to vector<8x32xf32>
    %44 = vector.extract_strided_slice %39 {offsets = [0, 96], sizes = [8, 32], strides = [1, 1]} : vector<8x128xf32> to vector<8x32xf32>
    %45 = arith.mulf %42, %29 : vector<8x32xf32>
    %46 = arith.mulf %41, %43 : vector<8x32xf32>
    %47 = arith.addf %45, %46 : vector<8x32xf32>
    %48 = math.tanh %47 : vector<8x32xf32>
    %49 = arith.mulf %44, %48 : vector<8x32xf32>
    %cst_33 = arith.constant dense<0.000000e+00> : vector<8x128xf32>
    %50 = tpu.matmul %49, %2, %cst_33 {dimension_numbers = #tpu.dot_dimension_numbers<[1], [0], [0], [1], [0, 0, 1, 1], [], []>} : vector<8x32xf32>, vector<32x128xf32>, vector<8x128xf32> -> vector<8x128xf32>
    %cst_34 = arith.constant dense<0.000000e+00> : vector<8x128xf32>
    %51 = tpu.matmul %49, %8, %cst_34 {dimension_numbers = #tpu.dot_dimension_numbers<[1], [0], [0], [1], [0, 0, 1, 1], [], []>} : vector<8x32xf32>, vector<32x128xf32>, vector<8x128xf32> -> vector<8x128xf32>
    %52 = arith.addf %51, %30 : vector<8x128xf32>
    %53 = arith.addf %52, %16 : vector<8x128xf32>
    %cst_35 = arith.constant 5.000000e-01 : f32
    %54 = vector.broadcast %cst_35 : f32 to vector<8x128xf32>
    %55 = arith.mulf %54, %53 : vector<8x128xf32>
    %56 = math.tanh %55 : vector<8x128xf32>
    %cst_36 = arith.constant 5.000000e-01 : f32
    %57 = vector.broadcast %cst_36 : f32 to vector<8x128xf32>
    %58 = arith.mulf %57, %56 : vector<8x128xf32>
    %cst_37 = arith.constant 5.000000e-01 : f32
    %59 = vector.broadcast %cst_37 : f32 to vector<8x128xf32>
    %60 = arith.addf %58, %59 : vector<8x128xf32>
    %61 = math.tanh %53 : vector<8x128xf32>
    %62 = vector.extract_strided_slice %60 {offsets = [0, 0], sizes = [8, 32], strides = [1, 1]} : vector<8x128xf32> to vector<8x32xf32>
    %63 = vector.extract_strided_slice %60 {offsets = [0, 32], sizes = [8, 32], strides = [1, 1]} : vector<8x128xf32> to vector<8x32xf32>
    %64 = vector.extract_strided_slice %61 {offsets = [0, 64], sizes = [8, 32], strides = [1, 1]} : vector<8x128xf32> to vector<8x32xf32>
    %65 = vector.extract_strided_slice %60 {offsets = [0, 96], sizes = [8, 32], strides = [1, 1]} : vector<8x128xf32> to vector<8x32xf32>
    %66 = arith.mulf %63, %29 : vector<8x32xf32>
    %67 = arith.mulf %62, %64 : vector<8x32xf32>
    %68 = arith.addf %66, %67 : vector<8x32xf32>
    %69 = math.tanh %68 : vector<8x32xf32>
    %70 = arith.mulf %65, %69 : vector<8x32xf32>
    %cst_38 = arith.constant dense<0.000000e+00> : vector<8x128xf32>
    %71 = tpu.matmul %70, %4, %cst_38 {dimension_numbers = #tpu.dot_dimension_numbers<[1], [0], [0], [1], [0, 0, 1, 1], [], []>} : vector<8x32xf32>, vector<32x128xf32>, vector<8x128xf32> -> vector<8x128xf32>
    %cst_39 = arith.constant dense<0.000000e+00> : vector<8x128xf32>
    %72 = tpu.matmul %70, %10, %cst_39 {dimension_numbers = #tpu.dot_dimension_numbers<[1], [0], [0], [1], [0, 0, 1, 1], [], []>} : vector<8x32xf32>, vector<32x128xf32>, vector<8x128xf32> -> vector<8x128xf32>
    %73 = arith.addf %72, %30 : vector<8x128xf32>
    %74 = arith.addf %73, %20 : vector<8x128xf32>
    %cst_40 = arith.constant 5.000000e-01 : f32
    %75 = vector.broadcast %cst_40 : f32 to vector<8x128xf32>
    %76 = arith.mulf %75, %74 : vector<8x128xf32>
    %77 = math.tanh %76 : vector<8x128xf32>
    %cst_41 = arith.constant 5.000000e-01 : f32
    %78 = vector.broadcast %cst_41 : f32 to vector<8x128xf32>
    %79 = arith.mulf %78, %77 : vector<8x128xf32>
    %cst_42 = arith.constant 5.000000e-01 : f32
    %80 = vector.broadcast %cst_42 : f32 to vector<8x128xf32>
    %81 = arith.addf %79, %80 : vector<8x128xf32>
    %82 = math.tanh %74 : vector<8x128xf32>
    %83 = vector.extract_strided_slice %81 {offsets = [0, 0], sizes = [8, 32], strides = [1, 1]} : vector<8x128xf32> to vector<8x32xf32>
    %84 = vector.extract_strided_slice %81 {offsets = [0, 32], sizes = [8, 32], strides = [1, 1]} : vector<8x128xf32> to vector<8x32xf32>
    %85 = vector.extract_strided_slice %82 {offsets = [0, 64], sizes = [8, 32], strides = [1, 1]} : vector<8x128xf32> to vector<8x32xf32>
    %86 = vector.extract_strided_slice %81 {offsets = [0, 96], sizes = [8, 32], strides = [1, 1]} : vector<8x128xf32> to vector<8x32xf32>
    %87 = arith.mulf %84, %29 : vector<8x32xf32>
    %88 = arith.mulf %83, %85 : vector<8x32xf32>
    %89 = arith.addf %87, %88 : vector<8x32xf32>
    %90 = math.tanh %89 : vector<8x32xf32>
    %91 = arith.mulf %86, %90 : vector<8x32xf32>
    %cst_43 = arith.constant dense<0.000000e+00> : vector<8x128xf32>
    %92 = tpu.matmul %91, %6, %cst_43 {dimension_numbers = #tpu.dot_dimension_numbers<[1], [0], [0], [1], [0, 0, 1, 1], [], []>} : vector<8x32xf32>, vector<32x128xf32>, vector<8x128xf32> -> vector<8x128xf32>
    %93 = vector.extract_strided_slice %28 {offsets = [8, 0], sizes = [8, 128], strides = [1, 1]} : vector<64x128xf32> to vector<8x128xf32>
    %94 = arith.addf %93, %50 : vector<8x128xf32>
    %cst_44 = arith.constant 5.000000e-01 : f32
    %95 = vector.broadcast %cst_44 : f32 to vector<8x128xf32>
    %96 = arith.mulf %95, %94 : vector<8x128xf32>
    %97 = math.tanh %96 : vector<8x128xf32>
    %cst_45 = arith.constant 5.000000e-01 : f32
    %98 = vector.broadcast %cst_45 : f32 to vector<8x128xf32>
    %99 = arith.mulf %98, %97 : vector<8x128xf32>
    %cst_46 = arith.constant 5.000000e-01 : f32
    %100 = vector.broadcast %cst_46 : f32 to vector<8x128xf32>
    %101 = arith.addf %99, %100 : vector<8x128xf32>
    %102 = math.tanh %94 : vector<8x128xf32>
    %103 = vector.extract_strided_slice %101 {offsets = [0, 0], sizes = [8, 32], strides = [1, 1]} : vector<8x128xf32> to vector<8x32xf32>
    %104 = vector.extract_strided_slice %101 {offsets = [0, 32], sizes = [8, 32], strides = [1, 1]} : vector<8x128xf32> to vector<8x32xf32>
    %105 = vector.extract_strided_slice %102 {offsets = [0, 64], sizes = [8, 32], strides = [1, 1]} : vector<8x128xf32> to vector<8x32xf32>
    %106 = vector.extract_strided_slice %101 {offsets = [0, 96], sizes = [8, 32], strides = [1, 1]} : vector<8x128xf32> to vector<8x32xf32>
    %107 = arith.mulf %104, %47 : vector<8x32xf32>
    %108 = arith.mulf %103, %105 : vector<8x32xf32>
    %109 = arith.addf %107, %108 : vector<8x32xf32>
    %110 = math.tanh %109 : vector<8x32xf32>
    %111 = arith.mulf %106, %110 : vector<8x32xf32>
    %cst_47 = arith.constant dense<0.000000e+00> : vector<8x128xf32>
    %112 = tpu.matmul %111, %2, %cst_47 {dimension_numbers = #tpu.dot_dimension_numbers<[1], [0], [0], [1], [0, 0, 1, 1], [], []>} : vector<8x32xf32>, vector<32x128xf32>, vector<8x128xf32> -> vector<8x128xf32>
    %cst_48 = arith.constant dense<0.000000e+00> : vector<8x128xf32>
    %113 = tpu.matmul %111, %8, %cst_48 {dimension_numbers = #tpu.dot_dimension_numbers<[1], [0], [0], [1], [0, 0, 1, 1], [], []>} : vector<8x32xf32>, vector<32x128xf32>, vector<8x128xf32> -> vector<8x128xf32>
    %114 = arith.addf %113, %71 : vector<8x128xf32>
    %115 = arith.addf %114, %16 : vector<8x128xf32>
    %cst_49 = arith.constant 5.000000e-01 : f32
    %116 = vector.broadcast %cst_49 : f32 to vector<8x128xf32>
    %117 = arith.mulf %116, %115 : vector<8x128xf32>
    %118 = math.tanh %117 : vector<8x128xf32>
    %cst_50 = arith.constant 5.000000e-01 : f32
    %119 = vector.broadcast %cst_50 : f32 to vector<8x128xf32>
    %120 = arith.mulf %119, %118 : vector<8x128xf32>
    %cst_51 = arith.constant 5.000000e-01 : f32
    %121 = vector.broadcast %cst_51 : f32 to vector<8x128xf32>
    %122 = arith.addf %120, %121 : vector<8x128xf32>
    %123 = math.tanh %115 : vector<8x128xf32>
    %124 = vector.extract_strided_slice %122 {offsets = [0, 0], sizes = [8, 32], strides = [1, 1]} : vector<8x128xf32> to vector<8x32xf32>
    %125 = vector.extract_strided_slice %122 {offsets = [0, 32], sizes = [8, 32], strides = [1, 1]} : vector<8x128xf32> to vector<8x32xf32>
    %126 = vector.extract_strided_slice %123 {offsets = [0, 64], sizes = [8, 32], strides = [1, 1]} : vector<8x128xf32> to vector<8x32xf32>
    %127 = vector.extract_strided_slice %122 {offsets = [0, 96], sizes = [8, 32], strides = [1, 1]} : vector<8x128xf32> to vector<8x32xf32>
    %128 = arith.mulf %125, %68 : vector<8x32xf32>
    %129 = arith.mulf %124, %126 : vector<8x32xf32>
    %130 = arith.addf %128, %129 : vector<8x32xf32>
    %131 = math.tanh %130 : vector<8x32xf32>
    %132 = arith.mulf %127, %131 : vector<8x32xf32>
    %cst_52 = arith.constant dense<0.000000e+00> : vector<8x128xf32>
    %133 = tpu.matmul %132, %4, %cst_52 {dimension_numbers = #tpu.dot_dimension_numbers<[1], [0], [0], [1], [0, 0, 1, 1], [], []>} : vector<8x32xf32>, vector<32x128xf32>, vector<8x128xf32> -> vector<8x128xf32>
    %cst_53 = arith.constant dense<0.000000e+00> : vector<8x128xf32>
    %134 = tpu.matmul %132, %10, %cst_53 {dimension_numbers = #tpu.dot_dimension_numbers<[1], [0], [0], [1], [0, 0, 1, 1], [], []>} : vector<8x32xf32>, vector<32x128xf32>, vector<8x128xf32> -> vector<8x128xf32>
    %135 = arith.addf %134, %92 : vector<8x128xf32>
    %136 = arith.addf %135, %20 : vector<8x128xf32>
    %cst_54 = arith.constant 5.000000e-01 : f32
    %137 = vector.broadcast %cst_54 : f32 to vector<8x128xf32>
    %138 = arith.mulf %137, %136 : vector<8x128xf32>
    %139 = math.tanh %138 : vector<8x128xf32>
    %cst_55 = arith.constant 5.000000e-01 : f32
    %140 = vector.broadcast %cst_55 : f32 to vector<8x128xf32>
    %141 = arith.mulf %140, %139 : vector<8x128xf32>
    %cst_56 = arith.constant 5.000000e-01 : f32
    %142 = vector.broadcast %cst_56 : f32 to vector<8x128xf32>
    %143 = arith.addf %141, %142 : vector<8x128xf32>
    %144 = math.tanh %136 : vector<8x128xf32>
    %145 = vector.extract_strided_slice %143 {offsets = [0, 0], sizes = [8, 32], strides = [1, 1]} : vector<8x128xf32> to vector<8x32xf32>
    %146 = vector.extract_strided_slice %143 {offsets = [0, 32], sizes = [8, 32], strides = [1, 1]} : vector<8x128xf32> to vector<8x32xf32>
    %147 = vector.extract_strided_slice %144 {offsets = [0, 64], sizes = [8, 32], strides = [1, 1]} : vector<8x128xf32> to vector<8x32xf32>
    %148 = vector.extract_strided_slice %143 {offsets = [0, 96], sizes = [8, 32], strides = [1, 1]} : vector<8x128xf32> to vector<8x32xf32>
    %149 = arith.mulf %146, %89 : vector<8x32xf32>
    %150 = arith.mulf %145, %147 : vector<8x32xf32>
    %151 = arith.addf %149, %150 : vector<8x32xf32>
    %152 = math.tanh %151 : vector<8x32xf32>
    %153 = arith.mulf %148, %152 : vector<8x32xf32>
    %cst_57 = arith.constant dense<0.000000e+00> : vector<8x128xf32>
    %154 = tpu.matmul %153, %6, %cst_57 {dimension_numbers = #tpu.dot_dimension_numbers<[1], [0], [0], [1], [0, 0, 1, 1], [], []>} : vector<8x32xf32>, vector<32x128xf32>, vector<8x128xf32> -> vector<8x128xf32>
    %155 = vector.extract_strided_slice %28 {offsets = [16, 0], sizes = [8, 128], strides = [1, 1]} : vector<64x128xf32> to vector<8x128xf32>
    %156 = arith.addf %155, %112 : vector<8x128xf32>
    %cst_58 = arith.constant 5.000000e-01 : f32
    %157 = vector.broadcast %cst_58 : f32 to vector<8x128xf32>
    %158 = arith.mulf %157, %156 : vector<8x128xf32>
    %159 = math.tanh %158 : vector<8x128xf32>
    %cst_59 = arith.constant 5.000000e-01 : f32
    %160 = vector.broadcast %cst_59 : f32 to vector<8x128xf32>
    %161 = arith.mulf %160, %159 : vector<8x128xf32>
    %cst_60 = arith.constant 5.000000e-01 : f32
    %162 = vector.broadcast %cst_60 : f32 to vector<8x128xf32>
    %163 = arith.addf %161, %162 : vector<8x128xf32>
    %164 = math.tanh %156 : vector<8x128xf32>
    %165 = vector.extract_strided_slice %163 {offsets = [0, 0], sizes = [8, 32], strides = [1, 1]} : vector<8x128xf32> to vector<8x32xf32>
    %166 = vector.extract_strided_slice %163 {offsets = [0, 32], sizes = [8, 32], strides = [1, 1]} : vector<8x128xf32> to vector<8x32xf32>
    %167 = vector.extract_strided_slice %164 {offsets = [0, 64], sizes = [8, 32], strides = [1, 1]} : vector<8x128xf32> to vector<8x32xf32>
    %168 = vector.extract_strided_slice %163 {offsets = [0, 96], sizes = [8, 32], strides = [1, 1]} : vector<8x128xf32> to vector<8x32xf32>
    %169 = arith.mulf %166, %109 : vector<8x32xf32>
    %170 = arith.mulf %165, %167 : vector<8x32xf32>
    %171 = arith.addf %169, %170 : vector<8x32xf32>
    %172 = math.tanh %171 : vector<8x32xf32>
    %173 = arith.mulf %168, %172 : vector<8x32xf32>
    %cst_61 = arith.constant dense<0.000000e+00> : vector<8x128xf32>
    %174 = tpu.matmul %173, %2, %cst_61 {dimension_numbers = #tpu.dot_dimension_numbers<[1], [0], [0], [1], [0, 0, 1, 1], [], []>} : vector<8x32xf32>, vector<32x128xf32>, vector<8x128xf32> -> vector<8x128xf32>
    %cst_62 = arith.constant dense<0.000000e+00> : vector<8x128xf32>
    %175 = tpu.matmul %173, %8, %cst_62 {dimension_numbers = #tpu.dot_dimension_numbers<[1], [0], [0], [1], [0, 0, 1, 1], [], []>} : vector<8x32xf32>, vector<32x128xf32>, vector<8x128xf32> -> vector<8x128xf32>
    %176 = arith.addf %175, %133 : vector<8x128xf32>
    %177 = arith.addf %176, %16 : vector<8x128xf32>
    %cst_63 = arith.constant 5.000000e-01 : f32
    %178 = vector.broadcast %cst_63 : f32 to vector<8x128xf32>
    %179 = arith.mulf %178, %177 : vector<8x128xf32>
    %180 = math.tanh %179 : vector<8x128xf32>
    %cst_64 = arith.constant 5.000000e-01 : f32
    %181 = vector.broadcast %cst_64 : f32 to vector<8x128xf32>
    %182 = arith.mulf %181, %180 : vector<8x128xf32>
    %cst_65 = arith.constant 5.000000e-01 : f32
    %183 = vector.broadcast %cst_65 : f32 to vector<8x128xf32>
    %184 = arith.addf %182, %183 : vector<8x128xf32>
    %185 = math.tanh %177 : vector<8x128xf32>
    %186 = vector.extract_strided_slice %184 {offsets = [0, 0], sizes = [8, 32], strides = [1, 1]} : vector<8x128xf32> to vector<8x32xf32>
    %187 = vector.extract_strided_slice %184 {offsets = [0, 32], sizes = [8, 32], strides = [1, 1]} : vector<8x128xf32> to vector<8x32xf32>
    %188 = vector.extract_strided_slice %185 {offsets = [0, 64], sizes = [8, 32], strides = [1, 1]} : vector<8x128xf32> to vector<8x32xf32>
    %189 = vector.extract_strided_slice %184 {offsets = [0, 96], sizes = [8, 32], strides = [1, 1]} : vector<8x128xf32> to vector<8x32xf32>
    %190 = arith.mulf %187, %130 : vector<8x32xf32>
    %191 = arith.mulf %186, %188 : vector<8x32xf32>
    %192 = arith.addf %190, %191 : vector<8x32xf32>
    %193 = math.tanh %192 : vector<8x32xf32>
    %194 = arith.mulf %189, %193 : vector<8x32xf32>
    %cst_66 = arith.constant dense<0.000000e+00> : vector<8x128xf32>
    %195 = tpu.matmul %194, %4, %cst_66 {dimension_numbers = #tpu.dot_dimension_numbers<[1], [0], [0], [1], [0, 0, 1, 1], [], []>} : vector<8x32xf32>, vector<32x128xf32>, vector<8x128xf32> -> vector<8x128xf32>
    %cst_67 = arith.constant dense<0.000000e+00> : vector<8x128xf32>
    %196 = tpu.matmul %194, %10, %cst_67 {dimension_numbers = #tpu.dot_dimension_numbers<[1], [0], [0], [1], [0, 0, 1, 1], [], []>} : vector<8x32xf32>, vector<32x128xf32>, vector<8x128xf32> -> vector<8x128xf32>
    %197 = arith.addf %196, %154 : vector<8x128xf32>
    %198 = arith.addf %197, %20 : vector<8x128xf32>
    %cst_68 = arith.constant 5.000000e-01 : f32
    %199 = vector.broadcast %cst_68 : f32 to vector<8x128xf32>
    %200 = arith.mulf %199, %198 : vector<8x128xf32>
    %201 = math.tanh %200 : vector<8x128xf32>
    %cst_69 = arith.constant 5.000000e-01 : f32
    %202 = vector.broadcast %cst_69 : f32 to vector<8x128xf32>
    %203 = arith.mulf %202, %201 : vector<8x128xf32>
    %cst_70 = arith.constant 5.000000e-01 : f32
    %204 = vector.broadcast %cst_70 : f32 to vector<8x128xf32>
    %205 = arith.addf %203, %204 : vector<8x128xf32>
    %206 = math.tanh %198 : vector<8x128xf32>
    %207 = vector.extract_strided_slice %205 {offsets = [0, 0], sizes = [8, 32], strides = [1, 1]} : vector<8x128xf32> to vector<8x32xf32>
    %208 = vector.extract_strided_slice %205 {offsets = [0, 32], sizes = [8, 32], strides = [1, 1]} : vector<8x128xf32> to vector<8x32xf32>
    %209 = vector.extract_strided_slice %206 {offsets = [0, 64], sizes = [8, 32], strides = [1, 1]} : vector<8x128xf32> to vector<8x32xf32>
    %210 = vector.extract_strided_slice %205 {offsets = [0, 96], sizes = [8, 32], strides = [1, 1]} : vector<8x128xf32> to vector<8x32xf32>
    %211 = arith.mulf %208, %151 : vector<8x32xf32>
    %212 = arith.mulf %207, %209 : vector<8x32xf32>
    %213 = arith.addf %211, %212 : vector<8x32xf32>
    %214 = math.tanh %213 : vector<8x32xf32>
    %215 = arith.mulf %210, %214 : vector<8x32xf32>
    %cst_71 = arith.constant dense<0.000000e+00> : vector<8x128xf32>
    %216 = tpu.matmul %215, %6, %cst_71 {dimension_numbers = #tpu.dot_dimension_numbers<[1], [0], [0], [1], [0, 0, 1, 1], [], []>} : vector<8x32xf32>, vector<32x128xf32>, vector<8x128xf32> -> vector<8x128xf32>
    %217 = vector.extract_strided_slice %28 {offsets = [24, 0], sizes = [8, 128], strides = [1, 1]} : vector<64x128xf32> to vector<8x128xf32>
    %218 = arith.addf %217, %174 : vector<8x128xf32>
    %cst_72 = arith.constant 5.000000e-01 : f32
    %219 = vector.broadcast %cst_72 : f32 to vector<8x128xf32>
    %220 = arith.mulf %219, %218 : vector<8x128xf32>
    %221 = math.tanh %220 : vector<8x128xf32>
    %cst_73 = arith.constant 5.000000e-01 : f32
    %222 = vector.broadcast %cst_73 : f32 to vector<8x128xf32>
    %223 = arith.mulf %222, %221 : vector<8x128xf32>
    %cst_74 = arith.constant 5.000000e-01 : f32
    %224 = vector.broadcast %cst_74 : f32 to vector<8x128xf32>
    %225 = arith.addf %223, %224 : vector<8x128xf32>
    %226 = math.tanh %218 : vector<8x128xf32>
    %227 = vector.extract_strided_slice %225 {offsets = [0, 0], sizes = [8, 32], strides = [1, 1]} : vector<8x128xf32> to vector<8x32xf32>
    %228 = vector.extract_strided_slice %225 {offsets = [0, 32], sizes = [8, 32], strides = [1, 1]} : vector<8x128xf32> to vector<8x32xf32>
    %229 = vector.extract_strided_slice %226 {offsets = [0, 64], sizes = [8, 32], strides = [1, 1]} : vector<8x128xf32> to vector<8x32xf32>
    %230 = vector.extract_strided_slice %225 {offsets = [0, 96], sizes = [8, 32], strides = [1, 1]} : vector<8x128xf32> to vector<8x32xf32>
    %231 = arith.mulf %228, %171 : vector<8x32xf32>
    %232 = arith.mulf %227, %229 : vector<8x32xf32>
    %233 = arith.addf %231, %232 : vector<8x32xf32>
    %234 = math.tanh %233 : vector<8x32xf32>
    %235 = arith.mulf %230, %234 : vector<8x32xf32>
    %cst_75 = arith.constant dense<0.000000e+00> : vector<8x128xf32>
    %236 = tpu.matmul %235, %2, %cst_75 {dimension_numbers = #tpu.dot_dimension_numbers<[1], [0], [0], [1], [0, 0, 1, 1], [], []>} : vector<8x32xf32>, vector<32x128xf32>, vector<8x128xf32> -> vector<8x128xf32>
    %cst_76 = arith.constant dense<0.000000e+00> : vector<8x128xf32>
    %237 = tpu.matmul %235, %8, %cst_76 {dimension_numbers = #tpu.dot_dimension_numbers<[1], [0], [0], [1], [0, 0, 1, 1], [], []>} : vector<8x32xf32>, vector<32x128xf32>, vector<8x128xf32> -> vector<8x128xf32>
    %238 = arith.addf %237, %195 : vector<8x128xf32>
    %239 = arith.addf %238, %16 : vector<8x128xf32>
    %cst_77 = arith.constant 5.000000e-01 : f32
    %240 = vector.broadcast %cst_77 : f32 to vector<8x128xf32>
    %241 = arith.mulf %240, %239 : vector<8x128xf32>
    %242 = math.tanh %241 : vector<8x128xf32>
    %cst_78 = arith.constant 5.000000e-01 : f32
    %243 = vector.broadcast %cst_78 : f32 to vector<8x128xf32>
    %244 = arith.mulf %243, %242 : vector<8x128xf32>
    %cst_79 = arith.constant 5.000000e-01 : f32
    %245 = vector.broadcast %cst_79 : f32 to vector<8x128xf32>
    %246 = arith.addf %244, %245 : vector<8x128xf32>
    %247 = math.tanh %239 : vector<8x128xf32>
    %248 = vector.extract_strided_slice %246 {offsets = [0, 0], sizes = [8, 32], strides = [1, 1]} : vector<8x128xf32> to vector<8x32xf32>
    %249 = vector.extract_strided_slice %246 {offsets = [0, 32], sizes = [8, 32], strides = [1, 1]} : vector<8x128xf32> to vector<8x32xf32>
    %250 = vector.extract_strided_slice %247 {offsets = [0, 64], sizes = [8, 32], strides = [1, 1]} : vector<8x128xf32> to vector<8x32xf32>
    %251 = vector.extract_strided_slice %246 {offsets = [0, 96], sizes = [8, 32], strides = [1, 1]} : vector<8x128xf32> to vector<8x32xf32>
    %252 = arith.mulf %249, %192 : vector<8x32xf32>
    %253 = arith.mulf %248, %250 : vector<8x32xf32>
    %254 = arith.addf %252, %253 : vector<8x32xf32>
    %255 = math.tanh %254 : vector<8x32xf32>
    %256 = arith.mulf %251, %255 : vector<8x32xf32>
    %cst_80 = arith.constant dense<0.000000e+00> : vector<8x128xf32>
    %257 = tpu.matmul %256, %4, %cst_80 {dimension_numbers = #tpu.dot_dimension_numbers<[1], [0], [0], [1], [0, 0, 1, 1], [], []>} : vector<8x32xf32>, vector<32x128xf32>, vector<8x128xf32> -> vector<8x128xf32>
    %cst_81 = arith.constant dense<0.000000e+00> : vector<8x128xf32>
    %258 = tpu.matmul %256, %10, %cst_81 {dimension_numbers = #tpu.dot_dimension_numbers<[1], [0], [0], [1], [0, 0, 1, 1], [], []>} : vector<8x32xf32>, vector<32x128xf32>, vector<8x128xf32> -> vector<8x128xf32>
    %259 = arith.addf %258, %216 : vector<8x128xf32>
    %260 = arith.addf %259, %20 : vector<8x128xf32>
    %cst_82 = arith.constant 5.000000e-01 : f32
    %261 = vector.broadcast %cst_82 : f32 to vector<8x128xf32>
    %262 = arith.mulf %261, %260 : vector<8x128xf32>
    %263 = math.tanh %262 : vector<8x128xf32>
    %cst_83 = arith.constant 5.000000e-01 : f32
    %264 = vector.broadcast %cst_83 : f32 to vector<8x128xf32>
    %265 = arith.mulf %264, %263 : vector<8x128xf32>
    %cst_84 = arith.constant 5.000000e-01 : f32
    %266 = vector.broadcast %cst_84 : f32 to vector<8x128xf32>
    %267 = arith.addf %265, %266 : vector<8x128xf32>
    %268 = math.tanh %260 : vector<8x128xf32>
    %269 = vector.extract_strided_slice %267 {offsets = [0, 0], sizes = [8, 32], strides = [1, 1]} : vector<8x128xf32> to vector<8x32xf32>
    %270 = vector.extract_strided_slice %267 {offsets = [0, 32], sizes = [8, 32], strides = [1, 1]} : vector<8x128xf32> to vector<8x32xf32>
    %271 = vector.extract_strided_slice %268 {offsets = [0, 64], sizes = [8, 32], strides = [1, 1]} : vector<8x128xf32> to vector<8x32xf32>
    %272 = vector.extract_strided_slice %267 {offsets = [0, 96], sizes = [8, 32], strides = [1, 1]} : vector<8x128xf32> to vector<8x32xf32>
    %273 = arith.mulf %270, %213 : vector<8x32xf32>
    %274 = arith.mulf %269, %271 : vector<8x32xf32>
    %275 = arith.addf %273, %274 : vector<8x32xf32>
    %276 = math.tanh %275 : vector<8x32xf32>
    %277 = arith.mulf %272, %276 : vector<8x32xf32>
    %cst_85 = arith.constant dense<0.000000e+00> : vector<8x128xf32>
    %278 = tpu.matmul %277, %6, %cst_85 {dimension_numbers = #tpu.dot_dimension_numbers<[1], [0], [0], [1], [0, 0, 1, 1], [], []>} : vector<8x32xf32>, vector<32x128xf32>, vector<8x128xf32> -> vector<8x128xf32>
    %279 = vector.extract_strided_slice %28 {offsets = [32, 0], sizes = [8, 128], strides = [1, 1]} : vector<64x128xf32> to vector<8x128xf32>
    %280 = arith.addf %279, %236 : vector<8x128xf32>
    %cst_86 = arith.constant 5.000000e-01 : f32
    %281 = vector.broadcast %cst_86 : f32 to vector<8x128xf32>
    %282 = arith.mulf %281, %280 : vector<8x128xf32>
    %283 = math.tanh %282 : vector<8x128xf32>
    %cst_87 = arith.constant 5.000000e-01 : f32
    %284 = vector.broadcast %cst_87 : f32 to vector<8x128xf32>
    %285 = arith.mulf %284, %283 : vector<8x128xf32>
    %cst_88 = arith.constant 5.000000e-01 : f32
    %286 = vector.broadcast %cst_88 : f32 to vector<8x128xf32>
    %287 = arith.addf %285, %286 : vector<8x128xf32>
    %288 = math.tanh %280 : vector<8x128xf32>
    %289 = vector.extract_strided_slice %287 {offsets = [0, 0], sizes = [8, 32], strides = [1, 1]} : vector<8x128xf32> to vector<8x32xf32>
    %290 = vector.extract_strided_slice %287 {offsets = [0, 32], sizes = [8, 32], strides = [1, 1]} : vector<8x128xf32> to vector<8x32xf32>
    %291 = vector.extract_strided_slice %288 {offsets = [0, 64], sizes = [8, 32], strides = [1, 1]} : vector<8x128xf32> to vector<8x32xf32>
    %292 = vector.extract_strided_slice %287 {offsets = [0, 96], sizes = [8, 32], strides = [1, 1]} : vector<8x128xf32> to vector<8x32xf32>
    %293 = arith.mulf %290, %233 : vector<8x32xf32>
    %294 = arith.mulf %289, %291 : vector<8x32xf32>
    %295 = arith.addf %293, %294 : vector<8x32xf32>
    %296 = math.tanh %295 : vector<8x32xf32>
    %297 = arith.mulf %292, %296 : vector<8x32xf32>
    %cst_89 = arith.constant dense<0.000000e+00> : vector<8x128xf32>
    %298 = tpu.matmul %297, %2, %cst_89 {dimension_numbers = #tpu.dot_dimension_numbers<[1], [0], [0], [1], [0, 0, 1, 1], [], []>} : vector<8x32xf32>, vector<32x128xf32>, vector<8x128xf32> -> vector<8x128xf32>
    %cst_90 = arith.constant dense<0.000000e+00> : vector<8x128xf32>
    %299 = tpu.matmul %297, %8, %cst_90 {dimension_numbers = #tpu.dot_dimension_numbers<[1], [0], [0], [1], [0, 0, 1, 1], [], []>} : vector<8x32xf32>, vector<32x128xf32>, vector<8x128xf32> -> vector<8x128xf32>
    %300 = arith.addf %299, %257 : vector<8x128xf32>
    %301 = arith.addf %300, %16 : vector<8x128xf32>
    %cst_91 = arith.constant 5.000000e-01 : f32
    %302 = vector.broadcast %cst_91 : f32 to vector<8x128xf32>
    %303 = arith.mulf %302, %301 : vector<8x128xf32>
    %304 = math.tanh %303 : vector<8x128xf32>
    %cst_92 = arith.constant 5.000000e-01 : f32
    %305 = vector.broadcast %cst_92 : f32 to vector<8x128xf32>
    %306 = arith.mulf %305, %304 : vector<8x128xf32>
    %cst_93 = arith.constant 5.000000e-01 : f32
    %307 = vector.broadcast %cst_93 : f32 to vector<8x128xf32>
    %308 = arith.addf %306, %307 : vector<8x128xf32>
    %309 = math.tanh %301 : vector<8x128xf32>
    %310 = vector.extract_strided_slice %308 {offsets = [0, 0], sizes = [8, 32], strides = [1, 1]} : vector<8x128xf32> to vector<8x32xf32>
    %311 = vector.extract_strided_slice %308 {offsets = [0, 32], sizes = [8, 32], strides = [1, 1]} : vector<8x128xf32> to vector<8x32xf32>
    %312 = vector.extract_strided_slice %309 {offsets = [0, 64], sizes = [8, 32], strides = [1, 1]} : vector<8x128xf32> to vector<8x32xf32>
    %313 = vector.extract_strided_slice %308 {offsets = [0, 96], sizes = [8, 32], strides = [1, 1]} : vector<8x128xf32> to vector<8x32xf32>
    %314 = arith.mulf %311, %254 : vector<8x32xf32>
    %315 = arith.mulf %310, %312 : vector<8x32xf32>
    %316 = arith.addf %314, %315 : vector<8x32xf32>
    %317 = math.tanh %316 : vector<8x32xf32>
    %318 = arith.mulf %313, %317 : vector<8x32xf32>
    %cst_94 = arith.constant dense<0.000000e+00> : vector<8x128xf32>
    %319 = tpu.matmul %318, %4, %cst_94 {dimension_numbers = #tpu.dot_dimension_numbers<[1], [0], [0], [1], [0, 0, 1, 1], [], []>} : vector<8x32xf32>, vector<32x128xf32>, vector<8x128xf32> -> vector<8x128xf32>
    %cst_95 = arith.constant dense<0.000000e+00> : vector<8x128xf32>
    %320 = tpu.matmul %318, %10, %cst_95 {dimension_numbers = #tpu.dot_dimension_numbers<[1], [0], [0], [1], [0, 0, 1, 1], [], []>} : vector<8x32xf32>, vector<32x128xf32>, vector<8x128xf32> -> vector<8x128xf32>
    %321 = arith.addf %320, %278 : vector<8x128xf32>
    %322 = arith.addf %321, %20 : vector<8x128xf32>
    %cst_96 = arith.constant 5.000000e-01 : f32
    %323 = vector.broadcast %cst_96 : f32 to vector<8x128xf32>
    %324 = arith.mulf %323, %322 : vector<8x128xf32>
    %325 = math.tanh %324 : vector<8x128xf32>
    %cst_97 = arith.constant 5.000000e-01 : f32
    %326 = vector.broadcast %cst_97 : f32 to vector<8x128xf32>
    %327 = arith.mulf %326, %325 : vector<8x128xf32>
    %cst_98 = arith.constant 5.000000e-01 : f32
    %328 = vector.broadcast %cst_98 : f32 to vector<8x128xf32>
    %329 = arith.addf %327, %328 : vector<8x128xf32>
    %330 = math.tanh %322 : vector<8x128xf32>
    %331 = vector.extract_strided_slice %329 {offsets = [0, 0], sizes = [8, 32], strides = [1, 1]} : vector<8x128xf32> to vector<8x32xf32>
    %332 = vector.extract_strided_slice %329 {offsets = [0, 32], sizes = [8, 32], strides = [1, 1]} : vector<8x128xf32> to vector<8x32xf32>
    %333 = vector.extract_strided_slice %330 {offsets = [0, 64], sizes = [8, 32], strides = [1, 1]} : vector<8x128xf32> to vector<8x32xf32>
    %334 = vector.extract_strided_slice %329 {offsets = [0, 96], sizes = [8, 32], strides = [1, 1]} : vector<8x128xf32> to vector<8x32xf32>
    %335 = arith.mulf %332, %275 : vector<8x32xf32>
    %336 = arith.mulf %331, %333 : vector<8x32xf32>
    %337 = arith.addf %335, %336 : vector<8x32xf32>
    %338 = math.tanh %337 : vector<8x32xf32>
    %339 = arith.mulf %334, %338 : vector<8x32xf32>
    %cst_99 = arith.constant dense<0.000000e+00> : vector<8x128xf32>
    %340 = tpu.matmul %339, %6, %cst_99 {dimension_numbers = #tpu.dot_dimension_numbers<[1], [0], [0], [1], [0, 0, 1, 1], [], []>} : vector<8x32xf32>, vector<32x128xf32>, vector<8x128xf32> -> vector<8x128xf32>
    %341 = vector.extract_strided_slice %28 {offsets = [40, 0], sizes = [8, 128], strides = [1, 1]} : vector<64x128xf32> to vector<8x128xf32>
    %342 = arith.addf %341, %298 : vector<8x128xf32>
    %cst_100 = arith.constant 5.000000e-01 : f32
    %343 = vector.broadcast %cst_100 : f32 to vector<8x128xf32>
    %344 = arith.mulf %343, %342 : vector<8x128xf32>
    %345 = math.tanh %344 : vector<8x128xf32>
    %cst_101 = arith.constant 5.000000e-01 : f32
    %346 = vector.broadcast %cst_101 : f32 to vector<8x128xf32>
    %347 = arith.mulf %346, %345 : vector<8x128xf32>
    %cst_102 = arith.constant 5.000000e-01 : f32
    %348 = vector.broadcast %cst_102 : f32 to vector<8x128xf32>
    %349 = arith.addf %347, %348 : vector<8x128xf32>
    %350 = math.tanh %342 : vector<8x128xf32>
    %351 = vector.extract_strided_slice %349 {offsets = [0, 0], sizes = [8, 32], strides = [1, 1]} : vector<8x128xf32> to vector<8x32xf32>
    %352 = vector.extract_strided_slice %349 {offsets = [0, 32], sizes = [8, 32], strides = [1, 1]} : vector<8x128xf32> to vector<8x32xf32>
    %353 = vector.extract_strided_slice %350 {offsets = [0, 64], sizes = [8, 32], strides = [1, 1]} : vector<8x128xf32> to vector<8x32xf32>
    %354 = vector.extract_strided_slice %349 {offsets = [0, 96], sizes = [8, 32], strides = [1, 1]} : vector<8x128xf32> to vector<8x32xf32>
    %355 = arith.mulf %352, %295 : vector<8x32xf32>
    %356 = arith.mulf %351, %353 : vector<8x32xf32>
    %357 = arith.addf %355, %356 : vector<8x32xf32>
    %358 = math.tanh %357 : vector<8x32xf32>
    %359 = arith.mulf %354, %358 : vector<8x32xf32>
    %cst_103 = arith.constant dense<0.000000e+00> : vector<8x128xf32>
    %360 = tpu.matmul %359, %2, %cst_103 {dimension_numbers = #tpu.dot_dimension_numbers<[1], [0], [0], [1], [0, 0, 1, 1], [], []>} : vector<8x32xf32>, vector<32x128xf32>, vector<8x128xf32> -> vector<8x128xf32>
    %cst_104 = arith.constant dense<0.000000e+00> : vector<8x128xf32>
    %361 = tpu.matmul %359, %8, %cst_104 {dimension_numbers = #tpu.dot_dimension_numbers<[1], [0], [0], [1], [0, 0, 1, 1], [], []>} : vector<8x32xf32>, vector<32x128xf32>, vector<8x128xf32> -> vector<8x128xf32>
    %362 = arith.addf %361, %319 : vector<8x128xf32>
    %363 = arith.addf %362, %16 : vector<8x128xf32>
    %cst_105 = arith.constant 5.000000e-01 : f32
    %364 = vector.broadcast %cst_105 : f32 to vector<8x128xf32>
    %365 = arith.mulf %364, %363 : vector<8x128xf32>
    %366 = math.tanh %365 : vector<8x128xf32>
    %cst_106 = arith.constant 5.000000e-01 : f32
    %367 = vector.broadcast %cst_106 : f32 to vector<8x128xf32>
    %368 = arith.mulf %367, %366 : vector<8x128xf32>
    %cst_107 = arith.constant 5.000000e-01 : f32
    %369 = vector.broadcast %cst_107 : f32 to vector<8x128xf32>
    %370 = arith.addf %368, %369 : vector<8x128xf32>
    %371 = math.tanh %363 : vector<8x128xf32>
    %372 = vector.extract_strided_slice %370 {offsets = [0, 0], sizes = [8, 32], strides = [1, 1]} : vector<8x128xf32> to vector<8x32xf32>
    %373 = vector.extract_strided_slice %370 {offsets = [0, 32], sizes = [8, 32], strides = [1, 1]} : vector<8x128xf32> to vector<8x32xf32>
    %374 = vector.extract_strided_slice %371 {offsets = [0, 64], sizes = [8, 32], strides = [1, 1]} : vector<8x128xf32> to vector<8x32xf32>
    %375 = vector.extract_strided_slice %370 {offsets = [0, 96], sizes = [8, 32], strides = [1, 1]} : vector<8x128xf32> to vector<8x32xf32>
    %376 = arith.mulf %373, %316 : vector<8x32xf32>
    %377 = arith.mulf %372, %374 : vector<8x32xf32>
    %378 = arith.addf %376, %377 : vector<8x32xf32>
    %379 = math.tanh %378 : vector<8x32xf32>
    %380 = arith.mulf %375, %379 : vector<8x32xf32>
    %cst_108 = arith.constant dense<0.000000e+00> : vector<8x128xf32>
    %381 = tpu.matmul %380, %4, %cst_108 {dimension_numbers = #tpu.dot_dimension_numbers<[1], [0], [0], [1], [0, 0, 1, 1], [], []>} : vector<8x32xf32>, vector<32x128xf32>, vector<8x128xf32> -> vector<8x128xf32>
    %cst_109 = arith.constant dense<0.000000e+00> : vector<8x128xf32>
    %382 = tpu.matmul %380, %10, %cst_109 {dimension_numbers = #tpu.dot_dimension_numbers<[1], [0], [0], [1], [0, 0, 1, 1], [], []>} : vector<8x32xf32>, vector<32x128xf32>, vector<8x128xf32> -> vector<8x128xf32>
    %383 = arith.addf %382, %340 : vector<8x128xf32>
    %384 = arith.addf %383, %20 : vector<8x128xf32>
    %cst_110 = arith.constant 5.000000e-01 : f32
    %385 = vector.broadcast %cst_110 : f32 to vector<8x128xf32>
    %386 = arith.mulf %385, %384 : vector<8x128xf32>
    %387 = math.tanh %386 : vector<8x128xf32>
    %cst_111 = arith.constant 5.000000e-01 : f32
    %388 = vector.broadcast %cst_111 : f32 to vector<8x128xf32>
    %389 = arith.mulf %388, %387 : vector<8x128xf32>
    %cst_112 = arith.constant 5.000000e-01 : f32
    %390 = vector.broadcast %cst_112 : f32 to vector<8x128xf32>
    %391 = arith.addf %389, %390 : vector<8x128xf32>
    %392 = math.tanh %384 : vector<8x128xf32>
    %393 = vector.extract_strided_slice %391 {offsets = [0, 0], sizes = [8, 32], strides = [1, 1]} : vector<8x128xf32> to vector<8x32xf32>
    %394 = vector.extract_strided_slice %391 {offsets = [0, 32], sizes = [8, 32], strides = [1, 1]} : vector<8x128xf32> to vector<8x32xf32>
    %395 = vector.extract_strided_slice %392 {offsets = [0, 64], sizes = [8, 32], strides = [1, 1]} : vector<8x128xf32> to vector<8x32xf32>
    %396 = vector.extract_strided_slice %391 {offsets = [0, 96], sizes = [8, 32], strides = [1, 1]} : vector<8x128xf32> to vector<8x32xf32>
    %397 = arith.mulf %394, %337 : vector<8x32xf32>
    %398 = arith.mulf %393, %395 : vector<8x32xf32>
    %399 = arith.addf %397, %398 : vector<8x32xf32>
    %400 = math.tanh %399 : vector<8x32xf32>
    %401 = arith.mulf %396, %400 : vector<8x32xf32>
    %cst_113 = arith.constant dense<0.000000e+00> : vector<8x128xf32>
    %402 = tpu.matmul %401, %6, %cst_113 {dimension_numbers = #tpu.dot_dimension_numbers<[1], [0], [0], [1], [0, 0, 1, 1], [], []>} : vector<8x32xf32>, vector<32x128xf32>, vector<8x128xf32> -> vector<8x128xf32>
    %403 = vector.extract_strided_slice %28 {offsets = [48, 0], sizes = [8, 128], strides = [1, 1]} : vector<64x128xf32> to vector<8x128xf32>
    %404 = arith.addf %403, %360 : vector<8x128xf32>
    %cst_114 = arith.constant 5.000000e-01 : f32
    %405 = vector.broadcast %cst_114 : f32 to vector<8x128xf32>
    %406 = arith.mulf %405, %404 : vector<8x128xf32>
    %407 = math.tanh %406 : vector<8x128xf32>
    %cst_115 = arith.constant 5.000000e-01 : f32
    %408 = vector.broadcast %cst_115 : f32 to vector<8x128xf32>
    %409 = arith.mulf %408, %407 : vector<8x128xf32>
    %cst_116 = arith.constant 5.000000e-01 : f32
    %410 = vector.broadcast %cst_116 : f32 to vector<8x128xf32>
    %411 = arith.addf %409, %410 : vector<8x128xf32>
    %412 = math.tanh %404 : vector<8x128xf32>
    %413 = vector.extract_strided_slice %411 {offsets = [0, 0], sizes = [8, 32], strides = [1, 1]} : vector<8x128xf32> to vector<8x32xf32>
    %414 = vector.extract_strided_slice %411 {offsets = [0, 32], sizes = [8, 32], strides = [1, 1]} : vector<8x128xf32> to vector<8x32xf32>
    %415 = vector.extract_strided_slice %412 {offsets = [0, 64], sizes = [8, 32], strides = [1, 1]} : vector<8x128xf32> to vector<8x32xf32>
    %416 = vector.extract_strided_slice %411 {offsets = [0, 96], sizes = [8, 32], strides = [1, 1]} : vector<8x128xf32> to vector<8x32xf32>
    %417 = arith.mulf %414, %357 : vector<8x32xf32>
    %418 = arith.mulf %413, %415 : vector<8x32xf32>
    %419 = arith.addf %417, %418 : vector<8x32xf32>
    %420 = math.tanh %419 : vector<8x32xf32>
    %421 = arith.mulf %416, %420 : vector<8x32xf32>
    %cst_117 = arith.constant dense<0.000000e+00> : vector<8x128xf32>
    %422 = tpu.matmul %421, %2, %cst_117 {dimension_numbers = #tpu.dot_dimension_numbers<[1], [0], [0], [1], [0, 0, 1, 1], [], []>} : vector<8x32xf32>, vector<32x128xf32>, vector<8x128xf32> -> vector<8x128xf32>
    %cst_118 = arith.constant dense<0.000000e+00> : vector<8x128xf32>
    %423 = tpu.matmul %421, %8, %cst_118 {dimension_numbers = #tpu.dot_dimension_numbers<[1], [0], [0], [1], [0, 0, 1, 1], [], []>} : vector<8x32xf32>, vector<32x128xf32>, vector<8x128xf32> -> vector<8x128xf32>
    %424 = arith.addf %423, %381 : vector<8x128xf32>
    %425 = arith.addf %424, %16 : vector<8x128xf32>
    %cst_119 = arith.constant 5.000000e-01 : f32
    %426 = vector.broadcast %cst_119 : f32 to vector<8x128xf32>
    %427 = arith.mulf %426, %425 : vector<8x128xf32>
    %428 = math.tanh %427 : vector<8x128xf32>
    %cst_120 = arith.constant 5.000000e-01 : f32
    %429 = vector.broadcast %cst_120 : f32 to vector<8x128xf32>
    %430 = arith.mulf %429, %428 : vector<8x128xf32>
    %cst_121 = arith.constant 5.000000e-01 : f32
    %431 = vector.broadcast %cst_121 : f32 to vector<8x128xf32>
    %432 = arith.addf %430, %431 : vector<8x128xf32>
    %433 = math.tanh %425 : vector<8x128xf32>
    %434 = vector.extract_strided_slice %432 {offsets = [0, 0], sizes = [8, 32], strides = [1, 1]} : vector<8x128xf32> to vector<8x32xf32>
    %435 = vector.extract_strided_slice %432 {offsets = [0, 32], sizes = [8, 32], strides = [1, 1]} : vector<8x128xf32> to vector<8x32xf32>
    %436 = vector.extract_strided_slice %433 {offsets = [0, 64], sizes = [8, 32], strides = [1, 1]} : vector<8x128xf32> to vector<8x32xf32>
    %437 = vector.extract_strided_slice %432 {offsets = [0, 96], sizes = [8, 32], strides = [1, 1]} : vector<8x128xf32> to vector<8x32xf32>
    %438 = arith.mulf %435, %378 : vector<8x32xf32>
    %439 = arith.mulf %434, %436 : vector<8x32xf32>
    %440 = arith.addf %438, %439 : vector<8x32xf32>
    %441 = math.tanh %440 : vector<8x32xf32>
    %442 = arith.mulf %437, %441 : vector<8x32xf32>
    %cst_122 = arith.constant dense<0.000000e+00> : vector<8x128xf32>
    %443 = tpu.matmul %442, %4, %cst_122 {dimension_numbers = #tpu.dot_dimension_numbers<[1], [0], [0], [1], [0, 0, 1, 1], [], []>} : vector<8x32xf32>, vector<32x128xf32>, vector<8x128xf32> -> vector<8x128xf32>
    %cst_123 = arith.constant dense<0.000000e+00> : vector<8x128xf32>
    %444 = tpu.matmul %442, %10, %cst_123 {dimension_numbers = #tpu.dot_dimension_numbers<[1], [0], [0], [1], [0, 0, 1, 1], [], []>} : vector<8x32xf32>, vector<32x128xf32>, vector<8x128xf32> -> vector<8x128xf32>
    %445 = arith.addf %444, %402 : vector<8x128xf32>
    %446 = arith.addf %445, %20 : vector<8x128xf32>
    %cst_124 = arith.constant 5.000000e-01 : f32
    %447 = vector.broadcast %cst_124 : f32 to vector<8x128xf32>
    %448 = arith.mulf %447, %446 : vector<8x128xf32>
    %449 = math.tanh %448 : vector<8x128xf32>
    %cst_125 = arith.constant 5.000000e-01 : f32
    %450 = vector.broadcast %cst_125 : f32 to vector<8x128xf32>
    %451 = arith.mulf %450, %449 : vector<8x128xf32>
    %cst_126 = arith.constant 5.000000e-01 : f32
    %452 = vector.broadcast %cst_126 : f32 to vector<8x128xf32>
    %453 = arith.addf %451, %452 : vector<8x128xf32>
    %454 = math.tanh %446 : vector<8x128xf32>
    %455 = vector.extract_strided_slice %453 {offsets = [0, 0], sizes = [8, 32], strides = [1, 1]} : vector<8x128xf32> to vector<8x32xf32>
    %456 = vector.extract_strided_slice %453 {offsets = [0, 32], sizes = [8, 32], strides = [1, 1]} : vector<8x128xf32> to vector<8x32xf32>
    %457 = vector.extract_strided_slice %454 {offsets = [0, 64], sizes = [8, 32], strides = [1, 1]} : vector<8x128xf32> to vector<8x32xf32>
    %458 = vector.extract_strided_slice %453 {offsets = [0, 96], sizes = [8, 32], strides = [1, 1]} : vector<8x128xf32> to vector<8x32xf32>
    %459 = arith.mulf %456, %399 : vector<8x32xf32>
    %460 = arith.mulf %455, %457 : vector<8x32xf32>
    %461 = arith.addf %459, %460 : vector<8x32xf32>
    %462 = math.tanh %461 : vector<8x32xf32>
    %463 = arith.mulf %458, %462 : vector<8x32xf32>
    %cst_127 = arith.constant dense<0.000000e+00> : vector<8x128xf32>
    %464 = tpu.matmul %463, %6, %cst_127 {dimension_numbers = #tpu.dot_dimension_numbers<[1], [0], [0], [1], [0, 0, 1, 1], [], []>} : vector<8x32xf32>, vector<32x128xf32>, vector<8x128xf32> -> vector<8x128xf32>
    %465 = vector.extract_strided_slice %28 {offsets = [56, 0], sizes = [8, 128], strides = [1, 1]} : vector<64x128xf32> to vector<8x128xf32>
    %466 = arith.addf %465, %422 : vector<8x128xf32>
    %cst_128 = arith.constant 5.000000e-01 : f32
    %467 = vector.broadcast %cst_128 : f32 to vector<8x128xf32>
    %468 = arith.mulf %467, %466 : vector<8x128xf32>
    %469 = math.tanh %468 : vector<8x128xf32>
    %cst_129 = arith.constant 5.000000e-01 : f32
    %470 = vector.broadcast %cst_129 : f32 to vector<8x128xf32>
    %471 = arith.mulf %470, %469 : vector<8x128xf32>
    %cst_130 = arith.constant 5.000000e-01 : f32
    %472 = vector.broadcast %cst_130 : f32 to vector<8x128xf32>
    %473 = arith.addf %471, %472 : vector<8x128xf32>
    %474 = math.tanh %466 : vector<8x128xf32>
    %475 = vector.extract_strided_slice %473 {offsets = [0, 0], sizes = [8, 32], strides = [1, 1]} : vector<8x128xf32> to vector<8x32xf32>
    %476 = vector.extract_strided_slice %473 {offsets = [0, 32], sizes = [8, 32], strides = [1, 1]} : vector<8x128xf32> to vector<8x32xf32>
    %477 = vector.extract_strided_slice %474 {offsets = [0, 64], sizes = [8, 32], strides = [1, 1]} : vector<8x128xf32> to vector<8x32xf32>
    %478 = vector.extract_strided_slice %473 {offsets = [0, 96], sizes = [8, 32], strides = [1, 1]} : vector<8x128xf32> to vector<8x32xf32>
    %479 = arith.mulf %476, %419 : vector<8x32xf32>
    %480 = arith.mulf %475, %477 : vector<8x32xf32>
    %481 = arith.addf %479, %480 : vector<8x32xf32>
    %482 = math.tanh %481 : vector<8x32xf32>
    %483 = arith.mulf %478, %482 : vector<8x32xf32>
    %cst_131 = arith.constant dense<0.000000e+00> : vector<8x128xf32>
    %484 = tpu.matmul %483, %8, %cst_131 {dimension_numbers = #tpu.dot_dimension_numbers<[1], [0], [0], [1], [0, 0, 1, 1], [], []>} : vector<8x32xf32>, vector<32x128xf32>, vector<8x128xf32> -> vector<8x128xf32>
    %485 = arith.addf %484, %443 : vector<8x128xf32>
    %486 = arith.addf %485, %16 : vector<8x128xf32>
    %cst_132 = arith.constant 5.000000e-01 : f32
    %487 = vector.broadcast %cst_132 : f32 to vector<8x128xf32>
    %488 = arith.mulf %487, %486 : vector<8x128xf32>
    %489 = math.tanh %488 : vector<8x128xf32>
    %cst_133 = arith.constant 5.000000e-01 : f32
    %490 = vector.broadcast %cst_133 : f32 to vector<8x128xf32>
    %491 = arith.mulf %490, %489 : vector<8x128xf32>
    %cst_134 = arith.constant 5.000000e-01 : f32
    %492 = vector.broadcast %cst_134 : f32 to vector<8x128xf32>
    %493 = arith.addf %491, %492 : vector<8x128xf32>
    %494 = math.tanh %486 : vector<8x128xf32>
    %495 = vector.extract_strided_slice %493 {offsets = [0, 0], sizes = [8, 32], strides = [1, 1]} : vector<8x128xf32> to vector<8x32xf32>
    %496 = vector.extract_strided_slice %493 {offsets = [0, 32], sizes = [8, 32], strides = [1, 1]} : vector<8x128xf32> to vector<8x32xf32>
    %497 = vector.extract_strided_slice %494 {offsets = [0, 64], sizes = [8, 32], strides = [1, 1]} : vector<8x128xf32> to vector<8x32xf32>
    %498 = vector.extract_strided_slice %493 {offsets = [0, 96], sizes = [8, 32], strides = [1, 1]} : vector<8x128xf32> to vector<8x32xf32>
    %499 = arith.mulf %496, %440 : vector<8x32xf32>
    %500 = arith.mulf %495, %497 : vector<8x32xf32>
    %501 = arith.addf %499, %500 : vector<8x32xf32>
    %502 = math.tanh %501 : vector<8x32xf32>
    %503 = arith.mulf %498, %502 : vector<8x32xf32>
    %cst_135 = arith.constant dense<0.000000e+00> : vector<8x128xf32>
    %504 = tpu.matmul %503, %10, %cst_135 {dimension_numbers = #tpu.dot_dimension_numbers<[1], [0], [0], [1], [0, 0, 1, 1], [], []>} : vector<8x32xf32>, vector<32x128xf32>, vector<8x128xf32> -> vector<8x128xf32>
    %505 = arith.addf %504, %464 : vector<8x128xf32>
    %506 = arith.addf %505, %20 : vector<8x128xf32>
    %cst_136 = arith.constant 5.000000e-01 : f32
    %507 = vector.broadcast %cst_136 : f32 to vector<8x128xf32>
    %508 = arith.mulf %507, %506 : vector<8x128xf32>
    %509 = math.tanh %508 : vector<8x128xf32>
    %cst_137 = arith.constant 5.000000e-01 : f32
    %510 = vector.broadcast %cst_137 : f32 to vector<8x128xf32>
    %511 = arith.mulf %510, %509 : vector<8x128xf32>
    %cst_138 = arith.constant 5.000000e-01 : f32
    %512 = vector.broadcast %cst_138 : f32 to vector<8x128xf32>
    %513 = arith.addf %511, %512 : vector<8x128xf32>
    %514 = math.tanh %506 : vector<8x128xf32>
    %515 = vector.extract_strided_slice %513 {offsets = [0, 0], sizes = [8, 32], strides = [1, 1]} : vector<8x128xf32> to vector<8x32xf32>
    %516 = vector.extract_strided_slice %513 {offsets = [0, 32], sizes = [8, 32], strides = [1, 1]} : vector<8x128xf32> to vector<8x32xf32>
    %517 = vector.extract_strided_slice %514 {offsets = [0, 64], sizes = [8, 32], strides = [1, 1]} : vector<8x128xf32> to vector<8x32xf32>
    %518 = vector.extract_strided_slice %513 {offsets = [0, 96], sizes = [8, 32], strides = [1, 1]} : vector<8x128xf32> to vector<8x32xf32>
    %519 = arith.mulf %516, %461 : vector<8x32xf32>
    %520 = arith.mulf %515, %517 : vector<8x32xf32>
    %521 = arith.addf %519, %520 : vector<8x32xf32>
    %522 = math.tanh %521 : vector<8x32xf32>
    %523 = arith.mulf %518, %522 : vector<8x32xf32>
    %524 = vector.broadcast %21 : vector<1x32xf32> to vector<8x32xf32>
    %525 = arith.mulf %523, %524 : vector<8x32xf32>
    %cst_139 = arith.constant dense<0.000000e+00> : vector<8xf32>
    %526 = vector.multi_reduction <add>, %525, %cst_139 [1] : vector<8x32xf32> to vector<8xf32>
    %527 = vector.shape_cast %526 : vector<8xf32> to vector<8x1xf32>
    %528 = vector.broadcast %22 : vector<1x1xf32> to vector<8x1xf32>
    %529 = arith.addf %527, %528 : vector<8x1xf32>
    %c0_140 = arith.constant 0 : index
    %c0_141 = arith.constant 0 : index
    %530 = vector.load %arg7[%c0_140, %c0_141] : memref<8x1xf32, #tpu.memory_space<vmem>>, vector<8x1xf32>
    tpu.vector_store %arg7[%c0_140, %c0_141], %529 {strides = array<i32>} : memref<8x1xf32, #tpu.memory_space<vmem>>, vector<8x1xf32>,
    return
  }
}

</mosaic_0001>

<llo_original>
// kernel: tpu_custom_call.1
$region0: #{tpu_custom_call.1}
  #allocation0 [shape = 'u32[]', space=smem, size = 0x4, offset = 0x4, fixed_abs, tag = 'smem constant byte address 0x4 - core index']
  #allocation1 [shape = 'u32[72,128]{1,0:T(1,128)}', space=vmem, size = 0x9000, scoped, tag = 'internal scratch']
  #allocation2 [shape = 'f32[1,1]{1,0:T(1,128)S(1)}', space=vmem, size = 0x200, scoped, tag = 'scoped memory for tpu_custom_call.1']
  %s0 = inlined_call_operand.vmem [shape: f32[64,1], index: 0, kind: input, shape index: {}]
  %s1 = inlined_call_operand.vmem [shape: f32[1,128], index: 1, kind: input, shape index: {}]
  %s2 = inlined_call_operand.hbm [shape: f32[3,32,128], index: 2, kind: input, shape index: {}]
  %s3 = inlined_call_operand.vmem [shape: f32[2,32,128], index: 3, kind: input, shape index: {}]
  %s4 = inlined_call_operand.vmem [shape: f32[3,1,128], index: 4, kind: input, shape index: {}]
  %s5 = inlined_call_operand.vmem [shape: f32[1,32], index: 5, kind: input, shape index: {}]
  %s6 = inlined_call_operand.<no memory space> [shape: f32[1,1], index: 6, kind: input, shape index: {}]
  %s7 = inlined_call_operand.vmem [shape: f32[8,1], index: 7, kind: output, shape index: {}]
  %s8 = sld [smem:[#allocation0]]
  $region42: #{tpu_custom_call.1} parent=0
    _
  %s10 = ssub.s32 1, %s8
  %s11 = scalar_select 0, %s10, %s8
  %v12 = vstv %s6
  %13 = vst [vmem:[#allocation2] sm:$0x1] %v12
  $region1: #{tpu_custom_call.1} parent=0
    #allocation3 [shape = 'u8[49152]{0}', space=vmem, size = 0xc000, scoped, tag = 'input window, operand 2, single buffered']
    #allocation4 [shape = 's32[1]{0}', space=sflag, size = 0x4, scoped, tag = 'scoped memory for tpu_custom_call.1']
    %14 = vsyncpa [#allocation4], 0
    // Predicated region
    $region2: #{tpu_custom_call.1} parent=1 // pred_check
      _
    $region3: #{tpu_custom_call.1} parent=1 // pred_check_branch
      %16 = sbr.rel (0) target = $region5
    $region4: #{tpu_custom_call.1} parent=1 // pred_region
      _
    $region5: #{tpu_custom_call.1} parent=1 // pred_fallthru
      _
    // Predicated region
    $region6: #{tpu_custom_call.1} parent=1 // pred_check
      _
    $region7: #{tpu_custom_call.1} parent=1 // pred_check_branch
      %18 = sbr.rel (0) target = $region9
    $region8: #{tpu_custom_call.1} parent=1 // pred_region
      _
    $region9: #{tpu_custom_call.1} parent=1 // pred_fallthru
      _
    // Predicated region
    $region10: #{tpu_custom_call.1} parent=1 // pred_check
      _
    $region11: #{tpu_custom_call.1} parent=1 // pred_check_branch
      %20 = sbr.rel (0) target = $region13
    $region12: #{tpu_custom_call.1} parent=1 // pred_region
      %22 = vsyncadd [#allocation4], 0
      %s23 = sshll.u32 %s2, 4
      %s24 = int_to_ptr.hbm [resolvable:$true] %s23
      %s25 = sshll.u32 [#allocation3], 4
      %s26 = int_to_ptr.vmem [resolvable:$true] %s25
      %31 = dma.hbm_to_vmem [thread:$0]  %s24, 1536, %s26, [#allocation4], 128, 128, 8
    $region13: #{tpu_custom_call.1} parent=1 // pred_fallthru
      _
    // Predicated region
    $region14: #{tpu_custom_call.1} parent=1 // pred_check
      _
    $region15: #{tpu_custom_call.1} parent=1 // pred_check_branch
      %33 = sbr.rel (0) target = $region17
    $region16: #{tpu_custom_call.1} parent=1 // pred_region
      _
    $region17: #{tpu_custom_call.1} parent=1 // pred_fallthru
      _
    // Predicated region
    $region18: #{tpu_custom_call.1} parent=1 // pred_check
      _
    $region19: #{tpu_custom_call.1} parent=1 // pred_check_branch
      %35 = sbr.rel (0) target = $region21
    $region20: #{tpu_custom_call.1} parent=1 // pred_region
      _
    $region21: #{tpu_custom_call.1} parent=1 // pred_fallthru
      _
    // Predicated region
    $region22: #{tpu_custom_call.1} parent=1 // pred_check
      _
    $region23: #{tpu_custom_call.1} parent=1 // pred_check_branch
      %37 = sbr.rel (0) target = $region25
    $region24: #{tpu_custom_call.1} parent=1 // pred_region
      _
    $region25: #{tpu_custom_call.1} parent=1 // pred_fallthru
      _
    // Predicated region
    $region26: #{tpu_custom_call.1} parent=1 // pred_check
      _
    $region27: #{tpu_custom_call.1} parent=1 // pred_check_branch
      %39 = sbr.rel (0) target = $region29
    $region28: #{tpu_custom_call.1} parent=1 // pred_region
      _
    $region29: #{tpu_custom_call.1} parent=1 // pred_fallthru
      _
    // Predicated region
    $region30: #{tpu_custom_call.1} parent=1 // pred_check
      _
    $region31: #{tpu_custom_call.1} parent=1 // pred_check_branch
      %41 = sbr.rel (0) target = $region33
    $region32: #{tpu_custom_call.1} parent=1 // pred_region
      %43 = dma.done [#allocation4], 1536
    $region33: #{tpu_custom_call.1} parent=1 // pred_fallthru
      _
    %v44 = vld [vmem:[%s1] sm:$0x1]
    %v45 = vld [vmem:[#allocation3] sm:$0xff]
    %v46 = vld [vmem:[#allocation3 + $0x8] sm:$0xff]
    %v47 = vld [vmem:[#allocation3 + $0x10] sm:$0xff]
    %v48 = vld [vmem:[#allocation3 + $0x18] sm:$0xff]
    %s49 = scalar_lea.vmem [#allocation3], 32
    %v50 = vld [vmem:[%s49] sm:$0xff]
    %v51 = vld [vmem:[%s49 + $0x8] sm:$0xff]
    %v52 = vld [vmem:[%s49 + $0x10] sm:$0xff]
    %v53 = vld [vmem:[%s49 + $0x18] sm:$0xff]
    %s54 = scalar_lea.vmem [#allocation3], 64
    %v55 = vld [vmem:[%s54] sm:$0xff]
    %v56 = vld [vmem:[%s54 + $0x8] sm:$0xff]
    %v57 = vld [vmem:[%s54 + $0x10] sm:$0xff]
    %v58 = vld [vmem:[%s54 + $0x18] sm:$0xff]
    %v59 = vld [vmem:[%s3] sm:$0xff]
    %v60 = vld [vmem:[%s3 + $0x8] sm:$0xff]
    %v61 = vld [vmem:[%s3 + $0x10] sm:$0xff]
    %v62 = vld [vmem:[%s3 + $0x18] sm:$0xff]
    %s63 = scalar_lea.vmem %s3, 32
    %v64 = vld [vmem:[%s63] sm:$0xff]
    %v65 = vld [vmem:[%s63 + $0x8] sm:$0xff]
    %v66 = vld [vmem:[%s63 + $0x10] sm:$0xff]
    %v67 = vld [vmem:[%s63 + $0x18] sm:$0xff]
    %v68 = vld [vmem:[%s4] sm:$0x1]
    %s69 = scalar_lea.vmem %s4, 1
    %v70 = vld [vmem:[%s69] sm:$0x1]
    %v72 = vperm.slane %v70, 0
    %s74 = scalar_lea.vmem %s4, 2
    %v75 = vld [vmem:[%s74] sm:$0x1]
    %v77 = vperm.slane %v75, 0
    %v79 = vld [vmem:[%s5] sm:$0x1]
    %v80 = vld [vmem:[#allocation2] sm:$0x1]
    %v81 = vld [vmem:[%s0] sm:$0xff]
    %v82 = vld [vmem:[%s0 + $0x8] sm:$0xff]
    %v83 = vld [vmem:[%s0 + $0x10] sm:$0xff]
    %v84 = vld [vmem:[%s0 + $0x18] sm:$0xff]
    %v85 = vld [vmem:[%s0 + $0x20] sm:$0xff]
    %v86 = vld [vmem:[%s0 + $0x28] sm:$0xff]
    %v87 = vld [vmem:[%s0 + $0x30] sm:$0xff]
    %v88 = vld [vmem:[%s0 + $0x38] sm:$0xff]
    %90 = vset.pattern.permute.xlu0 0
    %91 = vperm.xlu0 %90, %v81
    %v92 = vpop.permute.xlu0 %91
    %95 = vset.pattern.permute.xlu0 0
    %96 = vperm.xlu0 %95, %v82
    %v97 = vpop.permute.xlu0 %96
    %100 = vset.pattern.permute.xlu0 0
    %101 = vperm.xlu0 %100, %v83
    %v102 = vpop.permute.xlu0 %101
    %105 = vset.pattern.permute.xlu0 0
    %106 = vperm.xlu0 %105, %v84
    %v107 = vpop.permute.xlu0 %106
    %110 = vset.pattern.permute.xlu0 0
    %111 = vperm.xlu0 %110, %v85
    %v112 = vpop.permute.xlu0 %111
    %115 = vset.pattern.permute.xlu0 0
    %116 = vperm.xlu0 %115, %v86
    %v117 = vpop.permute.xlu0 %116
    %120 = vset.pattern.permute.xlu0 0
    %121 = vperm.xlu0 %120, %v87
    %v122 = vpop.permute.xlu0 %121
    %125 = vset.pattern.permute.xlu0 0
    %126 = vperm.xlu0 %125, %v88
    %v127 = vpop.permute.xlu0 %126
    %v130 = vperm.slane %v44, 0
    %v132 = vmul.f32 %v92, %v130
    %v133 = vmul.f32 %v97, %v130
    %v134 = vmul.f32 %v102, %v130
    %v135 = vmul.f32 %v107, %v130
    %v136 = vmul.f32 %v112, %v130
    %v137 = vmul.f32 %v117, %v130
    %v138 = vmul.f32 %v122, %v130
    %v139 = vmul.f32 %v127, %v130
    %v141 = vperm.slane %v68, 0
    %v143 = vadd.f32 %v132, %v141
    %v144 = vadd.f32 %v133, %v141
    %v145 = vadd.f32 %v134, %v141
    %v146 = vadd.f32 %v135, %v141
    %v147 = vadd.f32 %v136, %v141
    %v148 = vadd.f32 %v137, %v141
    %v149 = vadd.f32 %v138, %v141
    %v150 = vadd.f32 %v139, %v141
    %v151 = vadd.f32 %v143, 0.0
    %v152 = vmul.f32 %v151, 0.5
    %v153 = vtanh.pop %v152
    %v154 = vmul.f32 %v153, 0.5
    %v155 = vadd.f32 %v154, 0.5
    %v156 = vtanh.pop %v151
    %v157 = vmul.f32 %v155, 0.0
    %159 = vrot.lane.b32.xlu0 %v156, 64
    %v160 = vpop.permute.xlu0 %159
    %v162 = vmul.f32 %v155, %v160
    %164 = vrot.lane.b32.xlu0 %v162, 32
    %v165 = vpop.permute.xlu0 %164
    %v167 = vadd.f32 %v157, %v165
    %v168 = vtanh.pop %v167
    %170 = vrot.lane.b32.xlu0 %v168, 64
    %v171 = vpop.permute.xlu0 %170
    %v173 = vmul.f32 %v155, %v171
    %175 = vrot.lane.b32.xlu0 %v173, 32
    %v176 = vpop.permute.xlu0 %175
    %vm177 = vcmask 261120
    %v178 = vsel %vm177, %v176, 0
    %180 = vmatpush.msra.mxu0 0.0
    %181 = vmatpush.msra.mxu0 0.0
    %182 = vmatpush.msra.mxu0 0.0
    %183 = vmatpush.msra.mxu0 0.0
    %184 = vmatpush.msra.mxu0 0.0
    %185 = vmatpush.msra.mxu0 0.0
    %186 = vmatpush.msra.mxu0 0.0
    %187 = vmatpush.msra.mxu0 0.0
    %188 = vmatpush.msra.mxu0 0.0
    %189 = vmatpush.msra.mxu0 0.0
    %190 = vmatpush.msra.mxu0 0.0
    %191 = vmatpush.msra.mxu0 0.0
    %192 = vmatpush.msra.mxu0 %v48
    %193 = vmatpush.msra.mxu0 %v47
    %194 = vmatpush.msra.mxu0 %v46
    %195 = vmatpush.msra.mxu0 %v45
    %196 = vmatmul.f32.gmra.mxu0 %v178
    %v197 = vpop.f32.mrf.mxu0
    %v198 = vadd.f32 0.0, %v197
    %199 = vdwg.mxu0
    %200 = vmatpush.msra.mxu0 0.0
    %201 = vmatpush.msra.mxu0 0.0
    %202 = vmatpush.msra.mxu0 0.0
    %203 = vmatpush.msra.mxu0 0.0
    %204 = vmatpush.msra.mxu0 0.0
    %205 = vmatpush.msra.mxu0 0.0
    %206 = vmatpush.msra.mxu0 0.0
    %207 = vmatpush.msra.mxu0 0.0
    %208 = vmatpush.msra.mxu0 0.0
    %209 = vmatpush.msra.mxu0 0.0
    %210 = vmatpush.msra.mxu0 0.0
    %211 = vmatpush.msra.mxu0 0.0
    %212 = vmatpush.msra.mxu0 %v62
    %213 = vmatpush.msra.mxu0 %v61
    %214 = vmatpush.msra.mxu0 %v60
    %215 = vmatpush.msra.mxu0 %v59
    %216 = vmatmul.f32.gmra.mxu0 %v178
    %v217 = vpop.f32.mrf.mxu0
    %v218 = vadd.f32 %v72, %v217
    %219 = vdwg.mxu0
    %v220 = vmul.f32 %v218, 0.5
    %v221 = vtanh.pop %v220
    %v222 = vmul.f32 %v221, 0.5
    %v223 = vadd.f32 %v222, 0.5
    %v224 = vtanh.pop %v218
    %v225 = vmul.f32 %v223, 0.0
    %227 = vrot.lane.b32.xlu0 %v224, 64
    %v228 = vpop.permute.xlu0 %227
    %v230 = vmul.f32 %v223, %v228
    %232 = vrot.lane.b32.xlu0 %v230, 32
    %v233 = vpop.permute.xlu0 %232
    %v235 = vadd.f32 %v225, %v233
    %v236 = vtanh.pop %v235
    %238 = vrot.lane.b32.xlu0 %v236, 64
    %v239 = vpop.permute.xlu0 %238
    %v241 = vmul.f32 %v223, %v239
    %243 = vrot.lane.b32.xlu0 %v241, 32
    %v244 = vpop.permute.xlu0 %243
    %v245 = vsel %vm177, %v244, 0
    %247 = vmatpush.msra.mxu0 0.0
    %248 = vmatpush.msra.mxu0 0.0
    %249 = vmatpush.msra.mxu0 0.0
    %250 = vmatpush.msra.mxu0 0.0
    %251 = vmatpush.msra.mxu0 0.0
    %252 = vmatpush.msra.mxu0 0.0
    %253 = vmatpush.msra.mxu0 0.0
    %254 = vmatpush.msra.mxu0 0.0
    %255 = vmatpush.msra.mxu0 0.0
    %256 = vmatpush.msra.mxu0 0.0
    %257 = vmatpush.msra.mxu0 0.0
    %258 = vmatpush.msra.mxu0 0.0
    %259 = vmatpush.msra.mxu0 %v53
    %260 = vmatpush.msra.mxu0 %v52
    %261 = vmatpush.msra.mxu0 %v51
    %262 = vmatpush.msra.mxu0 %v50
    %263 = vmatmul.f32.gmra.mxu0 %v245
    %v264 = vpop.f32.mrf.mxu0
    %v265 = vadd.f32 0.0, %v264
    %266 = vdwg.mxu0
    %267 = vmatpush.msra.mxu0 0.0
    %268 = vmatpush.msra.mxu0 0.0
    %269 = vmatpush.msra.mxu0 0.0
    %270 = vmatpush.msra.mxu0 0.0
    %271 = vmatpush.msra.mxu0 0.0
    %272 = vmatpush.msra.mxu0 0.0
    %273 = vmatpush.msra.mxu0 0.0
    %274 = vmatpush.msra.mxu0 0.0
    %275 = vmatpush.msra.mxu0 0.0
    %276 = vmatpush.msra.mxu0 0.0
    %277 = vmatpush.msra.mxu0 0.0
    %278 = vmatpush.msra.mxu0 0.0
    %279 = vmatpush.msra.mxu0 %v67
    %280 = vmatpush.msra.mxu0 %v66
    %281 = vmatpush.msra.mxu0 %v65
    %282 = vmatpush.msra.mxu0 %v64
    %283 = vmatmul.f32.gmra.mxu0 %v245
    %v284 = vpop.f32.mrf.mxu0
    %v285 = vadd.f32 %v77, %v284
    %286 = vdwg.mxu0
    %v287 = vmul.f32 %v285, 0.5
    %v288 = vtanh.pop %v287
    %v289 = vmul.f32 %v288, 0.5
    %v290 = vadd.f32 %v289, 0.5
    %v291 = vtanh.pop %v285
    %v292 = vmul.f32 %v290, 0.0
    %294 = vrot.lane.b32.xlu0 %v291, 64
    %v295 = vpop.permute.xlu0 %294
    %v297 = vmul.f32 %v290, %v295
    %299 = vrot.lane.b32.xlu0 %v297, 32
    %v300 = vpop.permute.xlu0 %299
    %v302 = vadd.f32 %v292, %v300
    %v303 = vtanh.pop %v302
    %305 = vrot.lane.b32.xlu0 %v303, 64
    %v306 = vpop.permute.xlu0 %305
    %v308 = vmul.f32 %v290, %v306
    %310 = vrot.lane.b32.xlu0 %v308, 32
    %v311 = vpop.permute.xlu0 %310
    %v312 = vsel %vm177, %v311, 0
    %314 = vmatpush.msra.mxu0 0.0
    %315 = vmatpush.msra.mxu0 0.0
    %316 = vmatpush.msra.mxu0 0.0
    %317 = vmatpush.msra.mxu0 0.0
    %318 = vmatpush.msra.mxu0 0.0
    %319 = vmatpush.msra.mxu0 0.0
    %320 = vmatpush.msra.mxu0 0.0
    %321 = vmatpush.msra.mxu0 0.0
    %322 = vmatpush.msra.mxu0 0.0
    %323 = vmatpush.msra.mxu0 0.0
    %324 = vmatpush.msra.mxu0 0.0
    %325 = vmatpush.msra.mxu0 0.0
    %326 = vmatpush.msra.mxu0 %v58
    %327 = vmatpush.msra.mxu0 %v57
    %328 = vmatpush.msra.mxu0 %v56
    %329 = vmatpush.msra.mxu0 %v55
    %330 = vmatmul.f32.gmra.mxu0 %v312
    %v331 = vpop.f32.mrf.mxu0
    %v332 = vadd.f32 0.0, %v331
    %333 = vdwg.mxu0
    %v334 = vadd.f32 %v144, %v198
    %v335 = vmul.f32 %v334, 0.5
    %v336 = vtanh.pop %v335
    %v337 = vmul.f32 %v336, 0.5
    %v338 = vadd.f32 %v337, 0.5
    %v339 = vtanh.pop %v334
    %v340 = vmul.f32 %v338, %v167
    %342 = vrot.lane.b32.xlu0 %v339, 64
    %v343 = vpop.permute.xlu0 %342
    %v345 = vmul.f32 %v338, %v343
    %347 = vrot.lane.b32.xlu0 %v345, 32
    %v348 = vpop.permute.xlu0 %347
    %v350 = vadd.f32 %v340, %v348
    %v351 = vtanh.pop %v350
    %353 = vrot.lane.b32.xlu0 %v351, 64
    %v354 = vpop.permute.xlu0 %353
    %v356 = vmul.f32 %v338, %v354
    %358 = vrot.lane.b32.xlu0 %v356, 32
    %v359 = vpop.permute.xlu0 %358
    %v360 = vsel %vm177, %v359, 0
    %362 = vmatpush.msra.mxu0 0.0
    %363 = vmatpush.msra.mxu0 0.0
    %364 = vmatpush.msra.mxu0 0.0
    %365 = vmatpush.msra.mxu0 0.0
    %366 = vmatpush.msra.mxu0 0.0
    %367 = vmatpush.msra.mxu0 0.0
    %368 = vmatpush.msra.mxu0 0.0
    %369 = vmatpush.msra.mxu0 0.0
    %370 = vmatpush.msra.mxu0 0.0
    %371 = vmatpush.msra.mxu0 0.0
    %372 = vmatpush.msra.mxu0 0.0
    %373 = vmatpush.msra.mxu0 0.0
    %374 = vmatpush.msra.mxu0 %v48
    %375 = vmatpush.msra.mxu0 %v47
    %376 = vmatpush.msra.mxu0 %v46
    %377 = vmatpush.msra.mxu0 %v45
    %378 = vmatmul.f32.gmra.mxu0 %v360
    %v379 = vpop.f32.mrf.mxu0
    %v380 = vadd.f32 0.0, %v379
    %381 = vdwg.mxu0
    %382 = vmatpush.msra.mxu0 0.0
    %383 = vmatpush.msra.mxu0 0.0
    %384 = vmatpush.msra.mxu0 0.0
    %385 = vmatpush.msra.mxu0 0.0
    %386 = vmatpush.msra.mxu0 0.0
    %387 = vmatpush.msra.mxu0 0.0
    %388 = vmatpush.msra.mxu0 0.0
    %389 = vmatpush.msra.mxu0 0.0
    %390 = vmatpush.msra.mxu0 0.0
    %391 = vmatpush.msra.mxu0 0.0
    %392 = vmatpush.msra.mxu0 0.0
    %393 = vmatpush.msra.mxu0 0.0
    %394 = vmatpush.msra.mxu0 %v62
    %395 = vmatpush.msra.mxu0 %v61
    %396 = vmatpush.msra.mxu0 %v60
    %397 = vmatpush.msra.mxu0 %v59
    %398 = vmatmul.f32.gmra.mxu0 %v360
    %v399 = vpop.f32.mrf.mxu0
    %v400 = vadd.f32 %v265, %v399
    %401 = vdwg.mxu0
    %v402 = vadd.f32 %v400, %v72
    %v403 = vmul.f32 %v402, 0.5
    %v404 = vtanh.pop %v403
    %v405 = vmul.f32 %v404, 0.5
    %v406 = vadd.f32 %v405, 0.5
    %v407 = vtanh.pop %v402
    %v408 = vmul.f32 %v406, %v235
    %410 = vrot.lane.b32.xlu0 %v407, 64
    %v411 = vpop.permute.xlu0 %410
    %v413 = vmul.f32 %v406, %v411
    %415 = vrot.lane.b32.xlu0 %v413, 32
    %v416 = vpop.permute.xlu0 %415
    %v418 = vadd.f32 %v408, %v416
    %v419 = vtanh.pop %v418
    %421 = vrot.lane.b32.xlu0 %v419, 64
    %v422 = vpop.permute.xlu0 %421
    %v424 = vmul.f32 %v406, %v422
    %426 = vrot.lane.b32.xlu0 %v424, 32
    %v427 = vpop.permute.xlu0 %426
    %v428 = vsel %vm177, %v427, 0
    %430 = vmatpush.msra.mxu0 0.0
    %431 = vmatpush.msra.mxu0 0.0
    %432 = vmatpush.msra.mxu0 0.0
    %433 = vmatpush.msra.mxu0 0.0
    %434 = vmatpush.msra.mxu0 0.0
    %435 = vmatpush.msra.mxu0 0.0
    %436 = vmatpush.msra.mxu0 0.0
    %437 = vmatpush.msra.mxu0 0.0
    %438 = vmatpush.msra.mxu0 0.0
    %439 = vmatpush.msra.mxu0 0.0
    %440 = vmatpush.msra.mxu0 0.0
    %441 = vmatpush.msra.mxu0 0.0
    %442 = vmatpush.msra.mxu0 %v53
    %443 = vmatpush.msra.mxu0 %v52
    %444 = vmatpush.msra.mxu0 %v51
    %445 = vmatpush.msra.mxu0 %v50
    %446 = vmatmul.f32.gmra.mxu0 %v428
    %v447 = vpop.f32.mrf.mxu0
    %v448 = vadd.f32 0.0, %v447
    %449 = vdwg.mxu0
    %450 = vmatpush.msra.mxu0 0.0
    %451 = vmatpush.msra.mxu0 0.0
    %452 = vmatpush.msra.mxu0 0.0
    %453 = vmatpush.msra.mxu0 0.0
    %454 = vmatpush.msra.mxu0 0.0
    %455 = vmatpush.msra.mxu0 0.0
    %456 = vmatpush.msra.mxu0 0.0
    %457 = vmatpush.msra.mxu0 0.0
    %458 = vmatpush.msra.mxu0 0.0
    %459 = vmatpush.msra.mxu0 0.0
    %460 = vmatpush.msra.mxu0 0.0
    %461 = vmatpush.msra.mxu0 0.0
    %462 = vmatpush.msra.mxu0 %v67
    %463 = vmatpush.msra.mxu0 %v66
    %464 = vmatpush.msra.mxu0 %v65
    %465 = vmatpush.msra.mxu0 %v64
    %466 = vmatmul.f32.gmra.mxu0 %v428
    %v467 = vpop.f32.mrf.mxu0
    %v468 = vadd.f32 %v332, %v467
    %469 = vdwg.mxu0
    %v470 = vadd.f32 %v468, %v77
    %v471 = vmul.f32 %v470, 0.5
    %v472 = vtanh.pop %v471
    %v473 = vmul.f32 %v472, 0.5
    %v474 = vadd.f32 %v473, 0.5
    %v475 = vtanh.pop %v470
    %v476 = vmul.f32 %v474, %v302
    %478 = vrot.lane.b32.xlu0 %v475, 64
    %v479 = vpop.permute.xlu0 %478
    %v481 = vmul.f32 %v474, %v479
    %483 = vrot.lane.b32.xlu0 %v481, 32
    %v484 = vpop.permute.xlu0 %483
    %v486 = vadd.f32 %v476, %v484
    %v487 = vtanh.pop %v486
    %489 = vrot.lane.b32.xlu0 %v487, 64
    %v490 = vpop.permute.xlu0 %489
    %v492 = vmul.f32 %v474, %v490
    %494 = vrot.lane.b32.xlu0 %v492, 32
    %v495 = vpop.permute.xlu0 %494
    %v496 = vsel %vm177, %v495, 0
    %498 = vmatpush.msra.mxu0 0.0
    %499 = vmatpush.msra.mxu0 0.0
    %500 = vmatpush.msra.mxu0 0.0
    %501 = vmatpush.msra.mxu0 0.0
    %502 = vmatpush.msra.mxu0 0.0
    %503 = vmatpush.msra.mxu0 0.0
    %504 = vmatpush.msra.mxu0 0.0
    %505 = vmatpush.msra.mxu0 0.0
    %506 = vmatpush.msra.mxu0 0.0
    %507 = vmatpush.msra.mxu0 0.0
    %508 = vmatpush.msra.mxu0 0.0
    %509 = vmatpush.msra.mxu0 0.0
    %510 = vmatpush.msra.mxu0 %v58
    %511 = vmatpush.msra.mxu0 %v57
    %512 = vmatpush.msra.mxu0 %v56
    %513 = vmatpush.msra.mxu0 %v55
    %514 = vmatmul.f32.gmra.mxu0 %v496
    %v515 = vpop.f32.mrf.mxu0
    %v516 = vadd.f32 0.0, %v515
    %517 = vdwg.mxu0
    %v518 = vadd.f32 %v145, %v380
    %v519 = vmul.f32 %v518, 0.5
    %v520 = vtanh.pop %v519
    %v521 = vmul.f32 %v520, 0.5
    %v522 = vadd.f32 %v521, 0.5
    %v523 = vtanh.pop %v518
    %v524 = vmul.f32 %v522, %v350
    %526 = vrot.lane.b32.xlu0 %v523, 64
    %v527 = vpop.permute.xlu0 %526
    %v529 = vmul.f32 %v522, %v527
    %531 = vrot.lane.b32.xlu0 %v529, 32
    %v532 = vpop.permute.xlu0 %531
    %v534 = vadd.f32 %v524, %v532
    %v535 = vtanh.pop %v534
    %537 = vrot.lane.b32.xlu0 %v535, 64
    %v538 = vpop.permute.xlu0 %537
    %v540 = vmul.f32 %v522, %v538
    %542 = vrot.lane.b32.xlu0 %v540, 32
    %v543 = vpop.permute.xlu0 %542
    %v544 = vsel %vm177, %v543, 0
    %546 = vmatpush.msra.mxu0 0.0
    %547 = vmatpush.msra.mxu0 0.0
    %548 = vmatpush.msra.mxu0 0.0
    %549 = vmatpush.msra.mxu0 0.0
    %550 = vmatpush.msra.mxu0 0.0
    %551 = vmatpush.msra.mxu0 0.0
    %552 = vmatpush.msra.mxu0 0.0
    %553 = vmatpush.msra.mxu0 0.0
    %554 = vmatpush.msra.mxu0 0.0
    %555 = vmatpush.msra.mxu0 0.0
    %556 = vmatpush.msra.mxu0 0.0
    %557 = vmatpush.msra.mxu0 0.0
    %558 = vmatpush.msra.mxu0 %v48
    %559 = vmatpush.msra.mxu0 %v47
    %560 = vmatpush.msra.mxu0 %v46
    %561 = vmatpush.msra.mxu0 %v45
    %562 = vmatmul.f32.gmra.mxu0 %v544
    %v563 = vpop.f32.mrf.mxu0
    %v564 = vadd.f32 0.0, %v563
    %565 = vdwg.mxu0
    %566 = vmatpush.msra.mxu0 0.0
    %567 = vmatpush.msra.mxu0 0.0
    %568 = vmatpush.msra.mxu0 0.0
    %569 = vmatpush.msra.mxu0 0.0
    %570 = vmatpush.msra.mxu0 0.0
    %571 = vmatpush.msra.mxu0 0.0
    %572 = vmatpush.msra.mxu0 0.0
    %573 = vmatpush.msra.mxu0 0.0
    %574 = vmatpush.msra.mxu0 0.0
    %575 = vmatpush.msra.mxu0 0.0
    %576 = vmatpush.msra.mxu0 0.0
    %577 = vmatpush.msra.mxu0 0.0
    %578 = vmatpush.msra.mxu0 %v62
    %579 = vmatpush.msra.mxu0 %v61
    %580 = vmatpush.msra.mxu0 %v60
    %581 = vmatpush.msra.mxu0 %v59
    %582 = vmatmul.f32.gmra.mxu0 %v544
    %v583 = vpop.f32.mrf.mxu0
    %v584 = vadd.f32 %v448, %v583
    %585 = vdwg.mxu0
    %v586 = vadd.f32 %v584, %v72
    %v587 = vmul.f32 %v586, 0.5
    %v588 = vtanh.pop %v587
    %v589 = vmul.f32 %v588, 0.5
    %v590 = vadd.f32 %v589, 0.5
    %v591 = vtanh.pop %v586
    %v592 = vmul.f32 %v590, %v418
    %594 = vrot.lane.b32.xlu0 %v591, 64
    %v595 = vpop.permute.xlu0 %594
    %v597 = vmul.f32 %v590, %v595
    %599 = vrot.lane.b32.xlu0 %v597, 32
    %v600 = vpop.permute.xlu0 %599
    %v602 = vadd.f32 %v592, %v600
    %v603 = vtanh.pop %v602
    %605 = vrot.lane.b32.xlu0 %v603, 64
    %v606 = vpop.permute.xlu0 %605
    %v608 = vmul.f32 %v590, %v606
    %610 = vrot.lane.b32.xlu0 %v608, 32
    %v611 = vpop.permute.xlu0 %610
    %v612 = vsel %vm177, %v611, 0
    %614 = vmatpush.msra.mxu0 0.0
    %615 = vmatpush.msra.mxu0 0.0
    %616 = vmatpush.msra.mxu0 0.0
    %617 = vmatpush.msra.mxu0 0.0
    %618 = vmatpush.msra.mxu0 0.0
    %619 = vmatpush.msra.mxu0 0.0
    %620 = vmatpush.msra.mxu0 0.0
    %621 = vmatpush.msra.mxu0 0.0
    %622 = vmatpush.msra.mxu0 0.0
    %623 = vmatpush.msra.mxu0 0.0
    %624 = vmatpush.msra.mxu0 0.0
    %625 = vmatpush.msra.mxu0 0.0
    %626 = vmatpush.msra.mxu0 %v53
    %627 = vmatpush.msra.mxu0 %v52
    %628 = vmatpush.msra.mxu0 %v51
    %629 = vmatpush.msra.mxu0 %v50
    %630 = vmatmul.f32.gmra.mxu0 %v612
    %v631 = vpop.f32.mrf.mxu0
    %v632 = vadd.f32 0.0, %v631
    %633 = vdwg.mxu0
    %634 = vmatpush.msra.mxu0 0.0
    %635 = vmatpush.msra.mxu0 0.0
    %636 = vmatpush.msra.mxu0 0.0
    %637 = vmatpush.msra.mxu0 0.0
    %638 = vmatpush.msra.mxu0 0.0
    %639 = vmatpush.msra.mxu0 0.0
    %640 = vmatpush.msra.mxu0 0.0
    %641 = vmatpush.msra.mxu0 0.0
    %642 = vmatpush.msra.mxu0 0.0
    %643 = vmatpush.msra.mxu0 0.0
    %644 = vmatpush.msra.mxu0 0.0
    %645 = vmatpush.msra.mxu0 0.0
    %646 = vmatpush.msra.mxu0 %v67
    %647 = vmatpush.msra.mxu0 %v66
    %648 = vmatpush.msra.mxu0 %v65
    %649 = vmatpush.msra.mxu0 %v64
    %650 = vmatmul.f32.gmra.mxu0 %v612
    %v651 = vpop.f32.mrf.mxu0
    %v652 = vadd.f32 %v516, %v651
    %653 = vdwg.mxu0
    %v654 = vadd.f32 %v652, %v77
    %v655 = vmul.f32 %v654, 0.5
    %v656 = vtanh.pop %v655
    %v657 = vmul.f32 %v656, 0.5
    %v658 = vadd.f32 %v657, 0.5
    %v659 = vtanh.pop %v654
    %v660 = vmul.f32 %v658, %v486
    %662 = vrot.lane.b32.xlu0 %v659, 64
    %v663 = vpop.permute.xlu0 %662
    %v665 = vmul.f32 %v658, %v663
    %667 = vrot.lane.b32.xlu0 %v665, 32
    %v668 = vpop.permute.xlu0 %667
    %v670 = vadd.f32 %v660, %v668
    %v671 = vtanh.pop %v670
    %673 = vrot.lane.b32.xlu0 %v671, 64
    %v674 = vpop.permute.xlu0 %673
    %v676 = vmul.f32 %v658, %v674
    %678 = vrot.lane.b32.xlu0 %v676, 32
    %v679 = vpop.permute.xlu0 %678
    %v680 = vsel %vm177, %v679, 0
    %682 = vmatpush.msra.mxu0 0.0
    %683 = vmatpush.msra.mxu0 0.0
    %684 = vmatpush.msra.mxu0 0.0
    %685 = vmatpush.msra.mxu0 0.0
    %686 = vmatpush.msra.mxu0 0.0
    %687 = vmatpush.msra.mxu0 0.0
    %688 = vmatpush.msra.mxu0 0.0
    %689 = vmatpush.msra.mxu0 0.0
    %690 = vmatpush.msra.mxu0 0.0
    %691 = vmatpush.msra.mxu0 0.0
    %692 = vmatpush.msra.mxu0 0.0
    %693 = vmatpush.msra.mxu0 0.0
    %694 = vmatpush.msra.mxu0 %v58
    %695 = vmatpush.msra.mxu0 %v57
    %696 = vmatpush.msra.mxu0 %v56
    %697 = vmatpush.msra.mxu0 %v55
    %698 = vmatmul.f32.gmra.mxu0 %v680
    %v699 = vpop.f32.mrf.mxu0
    %v700 = vadd.f32 0.0, %v699
    %701 = vdwg.mxu0
    %v702 = vadd.f32 %v146, %v564
    %v703 = vmul.f32 %v702, 0.5
    %v704 = vtanh.pop %v703
    %v705 = vmul.f32 %v704, 0.5
    %v706 = vadd.f32 %v705, 0.5
    %v707 = vtanh.pop %v702
    %v708 = vmul.f32 %v706, %v534
    %710 = vrot.lane.b32.xlu0 %v707, 64
    %v711 = vpop.permute.xlu0 %710
    %v713 = vmul.f32 %v706, %v711
    %715 = vrot.lane.b32.xlu0 %v713, 32
    %v716 = vpop.permute.xlu0 %715
    %v718 = vadd.f32 %v708, %v716
    %v719 = vtanh.pop %v718
    %721 = vrot.lane.b32.xlu0 %v719, 64
    %v722 = vpop.permute.xlu0 %721
    %v724 = vmul.f32 %v706, %v722
    %726 = vrot.lane.b32.xlu0 %v724, 32
    %v727 = vpop.permute.xlu0 %726
    %v728 = vsel %vm177, %v727, 0
    %730 = vmatpush.msra.mxu0 0.0
    %731 = vmatpush.msra.mxu0 0.0
    %732 = vmatpush.msra.mxu0 0.0
    %733 = vmatpush.msra.mxu0 0.0
    %734 = vmatpush.msra.mxu0 0.0
    %735 = vmatpush.msra.mxu0 0.0
    %736 = vmatpush.msra.mxu0 0.0
    %737 = vmatpush.msra.mxu0 0.0
    %738 = vmatpush.msra.mxu0 0.0
    %739 = vmatpush.msra.mxu0 0.0
    %740 = vmatpush.msra.mxu0 0.0
    %741 = vmatpush.msra.mxu0 0.0
    %742 = vmatpush.msra.mxu0 %v48
    %743 = vmatpush.msra.mxu0 %v47
    %744 = vmatpush.msra.mxu0 %v46
    %745 = vmatpush.msra.mxu0 %v45
    %746 = vmatmul.f32.gmra.mxu0 %v728
    %v747 = vpop.f32.mrf.mxu0
    %v748 = vadd.f32 0.0, %v747
    %749 = vdwg.mxu0
    %750 = vmatpush.msra.mxu0 0.0
    %751 = vmatpush.msra.mxu0 0.0
    %752 = vmatpush.msra.mxu0 0.0
    %753 = vmatpush.msra.mxu0 0.0
    %754 = vmatpush.msra.mxu0 0.0
    %755 = vmatpush.msra.mxu0 0.0
    %756 = vmatpush.msra.mxu0 0.0
    %757 = vmatpush.msra.mxu0 0.0
    %758 = vmatpush.msra.mxu0 0.0
    %759 = vmatpush.msra.mxu0 0.0
    %760 = vmatpush.msra.mxu0 0.0
    %761 = vmatpush.msra.mxu0 0.0
    %762 = vmatpush.msra.mxu0 %v62
    %763 = vmatpush.msra.mxu0 %v61
    %764 = vmatpush.msra.mxu0 %v60
    %765 = vmatpush.msra.mxu0 %v59
    %766 = vmatmul.f32.gmra.mxu0 %v728
    %v767 = vpop.f32.mrf.mxu0
    %v768 = vadd.f32 %v632, %v767
    %769 = vdwg.mxu0
    %v770 = vadd.f32 %v768, %v72
    %v771 = vmul.f32 %v770, 0.5
    %v772 = vtanh.pop %v771
    %v773 = vmul.f32 %v772, 0.5
    %v774 = vadd.f32 %v773, 0.5
    %v775 = vtanh.pop %v770
    %v776 = vmul.f32 %v774, %v602
    %778 = vrot.lane.b32.xlu0 %v775, 64
    %v779 = vpop.permute.xlu0 %778
    %v781 = vmul.f32 %v774, %v779
    %783 = vrot.lane.b32.xlu0 %v781, 32
    %v784 = vpop.permute.xlu0 %783
    %v786 = vadd.f32 %v776, %v784
    %v787 = vtanh.pop %v786
    %789 = vrot.lane.b32.xlu0 %v787, 64
    %v790 = vpop.permute.xlu0 %789
    %v792 = vmul.f32 %v774, %v790
    %794 = vrot.lane.b32.xlu0 %v792, 32
    %v795 = vpop.permute.xlu0 %794
    %v796 = vsel %vm177, %v795, 0
    %798 = vmatpush.msra.mxu0 0.0
    %799 = vmatpush.msra.mxu0 0.0
    %800 = vmatpush.msra.mxu0 0.0
    %801 = vmatpush.msra.mxu0 0.0
    %802 = vmatpush.msra.mxu0 0.0
    %803 = vmatpush.msra.mxu0 0.0
    %804 = vmatpush.msra.mxu0 0.0
    %805 = vmatpush.msra.mxu0 0.0
    %806 = vmatpush.msra.mxu0 0.0
    %807 = vmatpush.msra.mxu0 0.0
    %808 = vmatpush.msra.mxu0 0.0
    %809 = vmatpush.msra.mxu0 0.0
    %810 = vmatpush.msra.mxu0 %v53
    %811 = vmatpush.msra.mxu0 %v52
    %812 = vmatpush.msra.mxu0 %v51
    %813 = vmatpush.msra.mxu0 %v50
    %814 = vmatmul.f32.gmra.mxu0 %v796
    %v815 = vpop.f32.mrf.mxu0
    %v816 = vadd.f32 0.0, %v815
    %817 = vdwg.mxu0
    %818 = vmatpush.msra.mxu0 0.0
    %819 = vmatpush.msra.mxu0 0.0
    %820 = vmatpush.msra.mxu0 0.0
    %821 = vmatpush.msra.mxu0 0.0
    %822 = vmatpush.msra.mxu0 0.0
    %823 = vmatpush.msra.mxu0 0.0
    %824 = vmatpush.msra.mxu0 0.0
    %825 = vmatpush.msra.mxu0 0.0
    %826 = vmatpush.msra.mxu0 0.0
    %827 = vmatpush.msra.mxu0 0.0
    %828 = vmatpush.msra.mxu0 0.0
    %829 = vmatpush.msra.mxu0 0.0
    %830 = vmatpush.msra.mxu0 %v67
    %831 = vmatpush.msra.mxu0 %v66
    %832 = vmatpush.msra.mxu0 %v65
    %833 = vmatpush.msra.mxu0 %v64
    %834 = vmatmul.f32.gmra.mxu0 %v796
    %v835 = vpop.f32.mrf.mxu0
    %v836 = vadd.f32 %v700, %v835
    %837 = vdwg.mxu0
    %v838 = vadd.f32 %v836, %v77
    %v839 = vmul.f32 %v838, 0.5
    %v840 = vtanh.pop %v839
    %v841 = vmul.f32 %v840, 0.5
    %v842 = vadd.f32 %v841, 0.5
    %v843 = vtanh.pop %v838
    %v844 = vmul.f32 %v842, %v670
    %846 = vrot.lane.b32.xlu0 %v843, 64
    %v847 = vpop.permute.xlu0 %846
    %v849 = vmul.f32 %v842, %v847
    %851 = vrot.lane.b32.xlu0 %v849, 32
    %v852 = vpop.permute.xlu0 %851
    %v854 = vadd.f32 %v844, %v852
    %v855 = vtanh.pop %v854
    %857 = vrot.lane.b32.xlu0 %v855, 64
    %v858 = vpop.permute.xlu0 %857
    %v860 = vmul.f32 %v842, %v858
    %862 = vrot.lane.b32.xlu0 %v860, 32
    %v863 = vpop.permute.xlu0 %862
    %v864 = vsel %vm177, %v863, 0
    %866 = vmatpush.msra.mxu0 0.0
    %867 = vmatpush.msra.mxu0 0.0
    %868 = vmatpush.msra.mxu0 0.0
    %869 = vmatpush.msra.mxu0 0.0
    %870 = vmatpush.msra.mxu0 0.0
    %871 = vmatpush.msra.mxu0 0.0
    %872 = vmatpush.msra.mxu0 0.0
    %873 = vmatpush.msra.mxu0 0.0
    %874 = vmatpush.msra.mxu0 0.0
    %875 = vmatpush.msra.mxu0 0.0
    %876 = vmatpush.msra.mxu0 0.0
    %877 = vmatpush.msra.mxu0 0.0
    %878 = vmatpush.msra.mxu0 %v58
    %879 = vmatpush.msra.mxu0 %v57
    %880 = vmatpush.msra.mxu0 %v56
    %881 = vmatpush.msra.mxu0 %v55
    %882 = vmatmul.f32.gmra.mxu0 %v864
    %v883 = vpop.f32.mrf.mxu0
    %v884 = vadd.f32 0.0, %v883
    %885 = vdwg.mxu0
    %v886 = vadd.f32 %v147, %v748
    %v887 = vmul.f32 %v886, 0.5
    %v888 = vtanh.pop %v887
    %v889 = vmul.f32 %v888, 0.5
    %v890 = vadd.f32 %v889, 0.5
    %v891 = vtanh.pop %v886
    %v892 = vmul.f32 %v890, %v718
    %894 = vrot.lane.b32.xlu0 %v891, 64
    %v895 = vpop.permute.xlu0 %894
    %v897 = vmul.f32 %v890, %v895
    %899 = vrot.lane.b32.xlu0 %v897, 32
    %v900 = vpop.permute.xlu0 %899
    %v902 = vadd.f32 %v892, %v900
    %v903 = vtanh.pop %v902
    %905 = vrot.lane.b32.xlu0 %v903, 64
    %v906 = vpop.permute.xlu0 %905
    %v908 = vmul.f32 %v890, %v906
    %910 = vrot.lane.b32.xlu0 %v908, 32
    %v911 = vpop.permute.xlu0 %910
    %v912 = vsel %vm177, %v911, 0
    %914 = vmatpush.msra.mxu0 0.0
    %915 = vmatpush.msra.mxu0 0.0
    %916 = vmatpush.msra.mxu0 0.0
    %917 = vmatpush.msra.mxu0 0.0
    %918 = vmatpush.msra.mxu0 0.0
    %919 = vmatpush.msra.mxu0 0.0
    %920 = vmatpush.msra.mxu0 0.0
    %921 = vmatpush.msra.mxu0 0.0
    %922 = vmatpush.msra.mxu0 0.0
    %923 = vmatpush.msra.mxu0 0.0
    %924 = vmatpush.msra.mxu0 0.0
    %925 = vmatpush.msra.mxu0 0.0
    %926 = vmatpush.msra.mxu0 %v48
    %927 = vmatpush.msra.mxu0 %v47
    %928 = vmatpush.msra.mxu0 %v46
    %929 = vmatpush.msra.mxu0 %v45
    %930 = vmatmul.f32.gmra.mxu0 %v912
    %v931 = vpop.f32.mrf.mxu0
    %v932 = vadd.f32 0.0, %v931
    %933 = vdwg.mxu0
    %934 = vmatpush.msra.mxu0 0.0
    %935 = vmatpush.msra.mxu0 0.0
    %936 = vmatpush.msra.mxu0 0.0
    %937 = vmatpush.msra.mxu0 0.0
    %938 = vmatpush.msra.mxu0 0.0
    %939 = vmatpush.msra.mxu0 0.0
    %940 = vmatpush.msra.mxu0 0.0
    %941 = vmatpush.msra.mxu0 0.0
    %942 = vmatpush.msra.mxu0 0.0
    %943 = vmatpush.msra.mxu0 0.0
    %944 = vmatpush.msra.mxu0 0.0
    %945 = vmatpush.msra.mxu0 0.0
    %946 = vmatpush.msra.mxu0 %v62
    %947 = vmatpush.msra.mxu0 %v61
    %948 = vmatpush.msra.mxu0 %v60
    %949 = vmatpush.msra.mxu0 %v59
    %950 = vmatmul.f32.gmra.mxu0 %v912
    %v951 = vpop.f32.mrf.mxu0
    %v952 = vadd.f32 %v816, %v951
    %953 = vdwg.mxu0
    %v954 = vadd.f32 %v952, %v72
    %v955 = vmul.f32 %v954, 0.5
    %v956 = vtanh.pop %v955
    %v957 = vmul.f32 %v956, 0.5
    %v958 = vadd.f32 %v957, 0.5
    %v959 = vtanh.pop %v954
    %v960 = vmul.f32 %v958, %v786
    %962 = vrot.lane.b32.xlu0 %v959, 64
    %v963 = vpop.permute.xlu0 %962
    %v965 = vmul.f32 %v958, %v963
    %967 = vrot.lane.b32.xlu0 %v965, 32
    %v968 = vpop.permute.xlu0 %967
    %v970 = vadd.f32 %v960, %v968
    %v971 = vtanh.pop %v970
    %973 = vrot.lane.b32.xlu0 %v971, 64
    %v974 = vpop.permute.xlu0 %973
    %v976 = vmul.f32 %v958, %v974
    %978 = vrot.lane.b32.xlu0 %v976, 32
    %v979 = vpop.permute.xlu0 %978
    %v980 = vsel %vm177, %v979, 0
    %982 = vmatpush.msra.mxu0 0.0
    %983 = vmatpush.msra.mxu0 0.0
    %984 = vmatpush.msra.mxu0 0.0
    %985 = vmatpush.msra.mxu0 0.0
    %986 = vmatpush.msra.mxu0 0.0
    %987 = vmatpush.msra.mxu0 0.0
    %988 = vmatpush.msra.mxu0 0.0
    %989 = vmatpush.msra.mxu0 0.0
    %990 = vmatpush.msra.mxu0 0.0
    %991 = vmatpush.msra.mxu0 0.0
    %992 = vmatpush.msra.mxu0 0.0
    %993 = vmatpush.msra.mxu0 0.0
    %994 = vmatpush.msra.mxu0 %v53
    %995 = vmatpush.msra.mxu0 %v52
    %996 = vmatpush.msra.mxu0 %v51
    %997 = vmatpush.msra.mxu0 %v50
    %998 = vmatmul.f32.gmra.mxu0 %v980
    %v999 = vpop.f32.mrf.mxu0
    %v1000 = vadd.f32 0.0, %v999
    %1001 = vdwg.mxu0
    %1002 = vmatpush.msra.mxu0 0.0
    %1003 = vmatpush.msra.mxu0 0.0
    %1004 = vmatpush.msra.mxu0 0.0
    %1005 = vmatpush.msra.mxu0 0.0
    %1006 = vmatpush.msra.mxu0 0.0
    %1007 = vmatpush.msra.mxu0 0.0
    %1008 = vmatpush.msra.mxu0 0.0
    %1009 = vmatpush.msra.mxu0 0.0
    %1010 = vmatpush.msra.mxu0 0.0
    %1011 = vmatpush.msra.mxu0 0.0
    %1012 = vmatpush.msra.mxu0 0.0
    %1013 = vmatpush.msra.mxu0 0.0
    %1014 = vmatpush.msra.mxu0 %v67
    %1015 = vmatpush.msra.mxu0 %v66
    %1016 = vmatpush.msra.mxu0 %v65
    %1017 = vmatpush.msra.mxu0 %v64
    %1018 = vmatmul.f32.gmra.mxu0 %v980
    %v1019 = vpop.f32.mrf.mxu0
    %v1020 = vadd.f32 %v884, %v1019
    %1021 = vdwg.mxu0
    %v1022 = vadd.f32 %v1020, %v77
    %v1023 = vmul.f32 %v1022, 0.5
    %v1024 = vtanh.pop %v1023
    %v1025 = vmul.f32 %v1024, 0.5
    %v1026 = vadd.f32 %v1025, 0.5
    %v1027 = vtanh.pop %v1022
    %v1028 = vmul.f32 %v1026, %v854
    %1030 = vrot.lane.b32.xlu0 %v1027, 64
    %v1031 = vpop.permute.xlu0 %1030
    %v1033 = vmul.f32 %v1026, %v1031
    %1035 = vrot.lane.b32.xlu0 %v1033, 32
    %v1036 = vpop.permute.xlu0 %1035
    %v1038 = vadd.f32 %v1028, %v1036
    %v1039 = vtanh.pop %v1038
    %1041 = vrot.lane.b32.xlu0 %v1039, 64
    %v1042 = vpop.permute.xlu0 %1041
    %v1044 = vmul.f32 %v1026, %v1042
    %1046 = vrot.lane.b32.xlu0 %v1044, 32
    %v1047 = vpop.permute.xlu0 %1046
    %v1048 = vsel %vm177, %v1047, 0
    %1050 = vmatpush.msra.mxu0 0.0
    %1051 = vmatpush.msra.mxu0 0.0
    %1052 = vmatpush.msra.mxu0 0.0
    %1053 = vmatpush.msra.mxu0 0.0
    %1054 = vmatpush.msra.mxu0 0.0
    %1055 = vmatpush.msra.mxu0 0.0
    %1056 = vmatpush.msra.mxu0 0.0
    %1057 = vmatpush.msra.mxu0 0.0
    %1058 = vmatpush.msra.mxu0 0.0
    %1059 = vmatpush.msra.mxu0 0.0
    %1060 = vmatpush.msra.mxu0 0.0
    %1061 = vmatpush.msra.mxu0 0.0
    %1062 = vmatpush.msra.mxu0 %v58
    %1063 = vmatpush.msra.mxu0 %v57
    %1064 = vmatpush.msra.mxu0 %v56
    %1065 = vmatpush.msra.mxu0 %v55
    %1066 = vmatmul.f32.gmra.mxu0 %v1048
    %v1067 = vpop.f32.mrf.mxu0
    %v1068 = vadd.f32 0.0, %v1067
    %1069 = vdwg.mxu0
    %v1070 = vadd.f32 %v148, %v932
    %v1071 = vmul.f32 %v1070, 0.5
    %v1072 = vtanh.pop %v1071
    %v1073 = vmul.f32 %v1072, 0.5
    %v1074 = vadd.f32 %v1073, 0.5
    %v1075 = vtanh.pop %v1070
    %v1076 = vmul.f32 %v1074, %v902
    %1078 = vrot.lane.b32.xlu0 %v1075, 64
    %v1079 = vpop.permute.xlu0 %1078
    %v1081 = vmul.f32 %v1074, %v1079
    %1083 = vrot.lane.b32.xlu0 %v1081, 32
    %v1084 = vpop.permute.xlu0 %1083
    %v1086 = vadd.f32 %v1076, %v1084
    %v1087 = vtanh.pop %v1086
    %1089 = vrot.lane.b32.xlu0 %v1087, 64
    %v1090 = vpop.permute.xlu0 %1089
    %v1092 = vmul.f32 %v1074, %v1090
    %1094 = vrot.lane.b32.xlu0 %v1092, 32
    %v1095 = vpop.permute.xlu0 %1094
    %v1096 = vsel %vm177, %v1095, 0
    %1098 = vmatpush.msra.mxu0 0.0
    %1099 = vmatpush.msra.mxu0 0.0
    %1100 = vmatpush.msra.mxu0 0.0
    %1101 = vmatpush.msra.mxu0 0.0
    %1102 = vmatpush.msra.mxu0 0.0
    %1103 = vmatpush.msra.mxu0 0.0
    %1104 = vmatpush.msra.mxu0 0.0
    %1105 = vmatpush.msra.mxu0 0.0
    %1106 = vmatpush.msra.mxu0 0.0
    %1107 = vmatpush.msra.mxu0 0.0
    %1108 = vmatpush.msra.mxu0 0.0
    %1109 = vmatpush.msra.mxu0 0.0
    %1110 = vmatpush.msra.mxu0 %v48
    %1111 = vmatpush.msra.mxu0 %v47
    %1112 = vmatpush.msra.mxu0 %v46
    %1113 = vmatpush.msra.mxu0 %v45
    %1114 = vmatmul.f32.gmra.mxu0 %v1096
    %v1115 = vpop.f32.mrf.mxu0
    %v1116 = vadd.f32 0.0, %v1115
    %1117 = vdwg.mxu0
    %1118 = vmatpush.msra.mxu0 0.0
    %1119 = vmatpush.msra.mxu0 0.0
    %1120 = vmatpush.msra.mxu0 0.0
    %1121 = vmatpush.msra.mxu0 0.0
    %1122 = vmatpush.msra.mxu0 0.0
    %1123 = vmatpush.msra.mxu0 0.0
    %1124 = vmatpush.msra.mxu0 0.0
    %1125 = vmatpush.msra.mxu0 0.0
    %1126 = vmatpush.msra.mxu0 0.0
    %1127 = vmatpush.msra.mxu0 0.0
    %1128 = vmatpush.msra.mxu0 0.0
    %1129 = vmatpush.msra.mxu0 0.0
    %1130 = vmatpush.msra.mxu0 %v62
    %1131 = vmatpush.msra.mxu0 %v61
    %1132 = vmatpush.msra.mxu0 %v60
    %1133 = vmatpush.msra.mxu0 %v59
    %1134 = vmatmul.f32.gmra.mxu0 %v1096
    %v1135 = vpop.f32.mrf.mxu0
    %v1136 = vadd.f32 %v1000, %v1135
    %1137 = vdwg.mxu0
    %v1138 = vadd.f32 %v1136, %v72
    %v1139 = vmul.f32 %v1138, 0.5
    %v1140 = vtanh.pop %v1139
    %v1141 = vmul.f32 %v1140, 0.5
    %v1142 = vadd.f32 %v1141, 0.5
    %v1143 = vtanh.pop %v1138
    %v1144 = vmul.f32 %v1142, %v970
    %1146 = vrot.lane.b32.xlu0 %v1143, 64
    %v1147 = vpop.permute.xlu0 %1146
    %v1149 = vmul.f32 %v1142, %v1147
    %1151 = vrot.lane.b32.xlu0 %v1149, 32
    %v1152 = vpop.permute.xlu0 %1151
    %v1154 = vadd.f32 %v1144, %v1152
    %v1155 = vtanh.pop %v1154
    %1157 = vrot.lane.b32.xlu0 %v1155, 64
    %v1158 = vpop.permute.xlu0 %1157
    %v1160 = vmul.f32 %v1142, %v1158
    %1162 = vrot.lane.b32.xlu0 %v1160, 32
    %v1163 = vpop.permute.xlu0 %1162
    %v1164 = vsel %vm177, %v1163, 0
    %1166 = vmatpush.msra.mxu0 0.0
    %1167 = vmatpush.msra.mxu0 0.0
    %1168 = vmatpush.msra.mxu0 0.0
    %1169 = vmatpush.msra.mxu0 0.0
    %1170 = vmatpush.msra.mxu0 0.0
    %1171 = vmatpush.msra.mxu0 0.0
    %1172 = vmatpush.msra.mxu0 0.0
    %1173 = vmatpush.msra.mxu0 0.0
    %1174 = vmatpush.msra.mxu0 0.0
    %1175 = vmatpush.msra.mxu0 0.0
    %1176 = vmatpush.msra.mxu0 0.0
    %1177 = vmatpush.msra.mxu0 0.0
    %1178 = vmatpush.msra.mxu0 %v53
    %1179 = vmatpush.msra.mxu0 %v52
    %1180 = vmatpush.msra.mxu0 %v51
    %1181 = vmatpush.msra.mxu0 %v50
    %1182 = vmatmul.f32.gmra.mxu0 %v1164
    %v1183 = vpop.f32.mrf.mxu0
    %v1184 = vadd.f32 0.0, %v1183
    %1185 = vdwg.mxu0
    %1186 = vmatpush.msra.mxu0 0.0
    %1187 = vmatpush.msra.mxu0 0.0
    %1188 = vmatpush.msra.mxu0 0.0
    %1189 = vmatpush.msra.mxu0 0.0
    %1190 = vmatpush.msra.mxu0 0.0
    %1191 = vmatpush.msra.mxu0 0.0
    %1192 = vmatpush.msra.mxu0 0.0
    %1193 = vmatpush.msra.mxu0 0.0
    %1194 = vmatpush.msra.mxu0 0.0
    %1195 = vmatpush.msra.mxu0 0.0
    %1196 = vmatpush.msra.mxu0 0.0
    %1197 = vmatpush.msra.mxu0 0.0
    %1198 = vmatpush.msra.mxu0 %v67
    %1199 = vmatpush.msra.mxu0 %v66
    %1200 = vmatpush.msra.mxu0 %v65
    %1201 = vmatpush.msra.mxu0 %v64
    %1202 = vmatmul.f32.gmra.mxu0 %v1164
    %v1203 = vpop.f32.mrf.mxu0
    %v1204 = vadd.f32 %v1068, %v1203
    %1205 = vdwg.mxu0
    %v1206 = vadd.f32 %v1204, %v77
    %v1207 = vmul.f32 %v1206, 0.5
    %v1208 = vtanh.pop %v1207
    %v1209 = vmul.f32 %v1208, 0.5
    %v1210 = vadd.f32 %v1209, 0.5
    %v1211 = vtanh.pop %v1206
    %v1212 = vmul.f32 %v1210, %v1038
    %1214 = vrot.lane.b32.xlu0 %v1211, 64
    %v1215 = vpop.permute.xlu0 %1214
    %v1217 = vmul.f32 %v1210, %v1215
    %1219 = vrot.lane.b32.xlu0 %v1217, 32
    %v1220 = vpop.permute.xlu0 %1219
    %v1222 = vadd.f32 %v1212, %v1220
    %v1223 = vtanh.pop %v1222
    %1225 = vrot.lane.b32.xlu0 %v1223, 64
    %v1226 = vpop.permute.xlu0 %1225
    %v1228 = vmul.f32 %v1210, %v1226
    %1230 = vrot.lane.b32.xlu0 %v1228, 32
    %v1231 = vpop.permute.xlu0 %1230
    %v1232 = vsel %vm177, %v1231, 0
    %1234 = vmatpush.msra.mxu0 0.0
    %1235 = vmatpush.msra.mxu0 0.0
    %1236 = vmatpush.msra.mxu0 0.0
    %1237 = vmatpush.msra.mxu0 0.0
    %1238 = vmatpush.msra.mxu0 0.0
    %1239 = vmatpush.msra.mxu0 0.0
    %1240 = vmatpush.msra.mxu0 0.0
    %1241 = vmatpush.msra.mxu0 0.0
    %1242 = vmatpush.msra.mxu0 0.0
    %1243 = vmatpush.msra.mxu0 0.0
    %1244 = vmatpush.msra.mxu0 0.0
    %1245 = vmatpush.msra.mxu0 0.0
    %1246 = vmatpush.msra.mxu0 %v58
    %1247 = vmatpush.msra.mxu0 %v57
    %1248 = vmatpush.msra.mxu0 %v56
    %1249 = vmatpush.msra.mxu0 %v55
    %1250 = vmatmul.f32.gmra.mxu0 %v1232
    %v1251 = vpop.f32.mrf.mxu0
    %v1252 = vadd.f32 0.0, %v1251
    %1253 = vdwg.mxu0
    %v1254 = vadd.f32 %v149, %v1116
    %v1255 = vmul.f32 %v1254, 0.5
    %v1256 = vtanh.pop %v1255
    %v1257 = vmul.f32 %v1256, 0.5
    %v1258 = vadd.f32 %v1257, 0.5
    %v1259 = vtanh.pop %v1254
    %v1260 = vmul.f32 %v1258, %v1086
    %1262 = vrot.lane.b32.xlu0 %v1259, 64
    %v1263 = vpop.permute.xlu0 %1262
    %v1265 = vmul.f32 %v1258, %v1263
    %1267 = vrot.lane.b32.xlu0 %v1265, 32
    %v1268 = vpop.permute.xlu0 %1267
    %v1270 = vadd.f32 %v1260, %v1268
    %v1271 = vtanh.pop %v1270
    %1273 = vrot.lane.b32.xlu0 %v1271, 64
    %v1274 = vpop.permute.xlu0 %1273
    %v1276 = vmul.f32 %v1258, %v1274
    %1278 = vrot.lane.b32.xlu0 %v1276, 32
    %v1279 = vpop.permute.xlu0 %1278
    %v1280 = vsel %vm177, %v1279, 0
    %1282 = vmatpush.msra.mxu0 0.0
    %1283 = vmatpush.msra.mxu0 0.0
    %1284 = vmatpush.msra.mxu0 0.0
    %1285 = vmatpush.msra.mxu0 0.0
    %1286 = vmatpush.msra.mxu0 0.0
    %1287 = vmatpush.msra.mxu0 0.0
    %1288 = vmatpush.msra.mxu0 0.0
    %1289 = vmatpush.msra.mxu0 0.0
    %1290 = vmatpush.msra.mxu0 0.0
    %1291 = vmatpush.msra.mxu0 0.0
    %1292 = vmatpush.msra.mxu0 0.0
    %1293 = vmatpush.msra.mxu0 0.0
    %1294 = vmatpush.msra.mxu0 %v48
    %1295 = vmatpush.msra.mxu0 %v47
    %1296 = vmatpush.msra.mxu0 %v46
    %1297 = vmatpush.msra.mxu0 %v45
    %1298 = vmatmul.f32.gmra.mxu0 %v1280
    %v1299 = vpop.f32.mrf.mxu0
    %v1300 = vadd.f32 0.0, %v1299
    %1301 = vdwg.mxu0
    %1302 = vmatpush.msra.mxu0 0.0
    %1303 = vmatpush.msra.mxu0 0.0
    %1304 = vmatpush.msra.mxu0 0.0
    %1305 = vmatpush.msra.mxu0 0.0
    %1306 = vmatpush.msra.mxu0 0.0
    %1307 = vmatpush.msra.mxu0 0.0
    %1308 = vmatpush.msra.mxu0 0.0
    %1309 = vmatpush.msra.mxu0 0.0
    %1310 = vmatpush.msra.mxu0 0.0
    %1311 = vmatpush.msra.mxu0 0.0
    %1312 = vmatpush.msra.mxu0 0.0
    %1313 = vmatpush.msra.mxu0 0.0
    %1314 = vmatpush.msra.mxu0 %v62
    %1315 = vmatpush.msra.mxu0 %v61
    %1316 = vmatpush.msra.mxu0 %v60
    %1317 = vmatpush.msra.mxu0 %v59
    %1318 = vmatmul.f32.gmra.mxu0 %v1280
    %v1319 = vpop.f32.mrf.mxu0
    %v1320 = vadd.f32 %v1184, %v1319
    %1321 = vdwg.mxu0
    %v1322 = vadd.f32 %v1320, %v72
    %v1323 = vmul.f32 %v1322, 0.5
    %v1324 = vtanh.pop %v1323
    %v1325 = vmul.f32 %v1324, 0.5
    %v1326 = vadd.f32 %v1325, 0.5
    %v1327 = vtanh.pop %v1322
    %v1328 = vmul.f32 %v1326, %v1154
    %1330 = vrot.lane.b32.xlu0 %v1327, 64
    %v1331 = vpop.permute.xlu0 %1330
    %v1333 = vmul.f32 %v1326, %v1331
    %1335 = vrot.lane.b32.xlu0 %v1333, 32
    %v1336 = vpop.permute.xlu0 %1335
    %v1338 = vadd.f32 %v1328, %v1336
    %v1339 = vtanh.pop %v1338
    %1341 = vrot.lane.b32.xlu0 %v1339, 64
    %v1342 = vpop.permute.xlu0 %1341
    %v1344 = vmul.f32 %v1326, %v1342
    %1346 = vrot.lane.b32.xlu0 %v1344, 32
    %v1347 = vpop.permute.xlu0 %1346
    %v1348 = vsel %vm177, %v1347, 0
    %1350 = vmatpush.msra.mxu0 0.0
    %1351 = vmatpush.msra.mxu0 0.0
    %1352 = vmatpush.msra.mxu0 0.0
    %1353 = vmatpush.msra.mxu0 0.0
    %1354 = vmatpush.msra.mxu0 0.0
    %1355 = vmatpush.msra.mxu0 0.0
    %1356 = vmatpush.msra.mxu0 0.0
    %1357 = vmatpush.msra.mxu0 0.0
    %1358 = vmatpush.msra.mxu0 0.0
    %1359 = vmatpush.msra.mxu0 0.0
    %1360 = vmatpush.msra.mxu0 0.0
    %1361 = vmatpush.msra.mxu0 0.0
    %1362 = vmatpush.msra.mxu0 %v53
    %1363 = vmatpush.msra.mxu0 %v52
    %1364 = vmatpush.msra.mxu0 %v51
    %1365 = vmatpush.msra.mxu0 %v50
    %1366 = vmatmul.f32.gmra.mxu0 %v1348
    %v1367 = vpop.f32.mrf.mxu0
    %v1368 = vadd.f32 0.0, %v1367
    %1369 = vdwg.mxu0
    %1370 = vmatpush.msra.mxu0 0.0
    %1371 = vmatpush.msra.mxu0 0.0
    %1372 = vmatpush.msra.mxu0 0.0
    %1373 = vmatpush.msra.mxu0 0.0
    %1374 = vmatpush.msra.mxu0 0.0
    %1375 = vmatpush.msra.mxu0 0.0
    %1376 = vmatpush.msra.mxu0 0.0
    %1377 = vmatpush.msra.mxu0 0.0
    %1378 = vmatpush.msra.mxu0 0.0
    %1379 = vmatpush.msra.mxu0 0.0
    %1380 = vmatpush.msra.mxu0 0.0
    %1381 = vmatpush.msra.mxu0 0.0
    %1382 = vmatpush.msra.mxu0 %v67
    %1383 = vmatpush.msra.mxu0 %v66
    %1384 = vmatpush.msra.mxu0 %v65
    %1385 = vmatpush.msra.mxu0 %v64
    %1386 = vmatmul.f32.gmra.mxu0 %v1348
    %v1387 = vpop.f32.mrf.mxu0
    %v1388 = vadd.f32 %v1252, %v1387
    %1389 = vdwg.mxu0
    %v1390 = vadd.f32 %v1388, %v77
    %v1391 = vmul.f32 %v1390, 0.5
    %v1392 = vtanh.pop %v1391
    %v1393 = vmul.f32 %v1392, 0.5
    %v1394 = vadd.f32 %v1393, 0.5
    %v1395 = vtanh.pop %v1390
    %v1396 = vmul.f32 %v1394, %v1222
    %1398 = vrot.lane.b32.xlu0 %v1395, 64
    %v1399 = vpop.permute.xlu0 %1398
    %v1401 = vmul.f32 %v1394, %v1399
    %1403 = vrot.lane.b32.xlu0 %v1401, 32
    %v1404 = vpop.permute.xlu0 %1403
    %v1406 = vadd.f32 %v1396, %v1404
    %v1407 = vtanh.pop %v1406
    %1409 = vrot.lane.b32.xlu0 %v1407, 64
    %v1410 = vpop.permute.xlu0 %1409
    %v1412 = vmul.f32 %v1394, %v1410
    %1414 = vrot.lane.b32.xlu0 %v1412, 32
    %v1415 = vpop.permute.xlu0 %1414
    %v1416 = vsel %vm177, %v1415, 0
    %1418 = vmatpush.msra.mxu0 0.0
    %1419 = vmatpush.msra.mxu0 0.0
    %1420 = vmatpush.msra.mxu0 0.0
    %1421 = vmatpush.msra.mxu0 0.0
    %1422 = vmatpush.msra.mxu0 0.0
    %1423 = vmatpush.msra.mxu0 0.0
    %1424 = vmatpush.msra.mxu0 0.0
    %1425 = vmatpush.msra.mxu0 0.0
    %1426 = vmatpush.msra.mxu0 0.0
    %1427 = vmatpush.msra.mxu0 0.0
    %1428 = vmatpush.msra.mxu0 0.0
    %1429 = vmatpush.msra.mxu0 0.0
    %1430 = vmatpush.msra.mxu0 %v58
    %1431 = vmatpush.msra.mxu0 %v57
    %1432 = vmatpush.msra.mxu0 %v56
    %1433 = vmatpush.msra.mxu0 %v55
    %1434 = vmatmul.f32.gmra.mxu0 %v1416
    %v1435 = vpop.f32.mrf.mxu0
    %v1436 = vadd.f32 0.0, %v1435
    %1437 = vdwg.mxu0
    %v1438 = vadd.f32 %v150, %v1300
    %v1439 = vmul.f32 %v1438, 0.5
    %v1440 = vtanh.pop %v1439
    %v1441 = vmul.f32 %v1440, 0.5
    %v1442 = vadd.f32 %v1441, 0.5
    %v1443 = vtanh.pop %v1438
    %v1444 = vmul.f32 %v1442, %v1270
    %1446 = vrot.lane.b32.xlu0 %v1443, 64
    %v1447 = vpop.permute.xlu0 %1446
    %v1449 = vmul.f32 %v1442, %v1447
    %1451 = vrot.lane.b32.xlu0 %v1449, 32
    %v1452 = vpop.permute.xlu0 %1451
    %v1454 = vadd.f32 %v1444, %v1452
    %v1455 = vtanh.pop %v1454
    %1457 = vrot.lane.b32.xlu0 %v1455, 64
    %v1458 = vpop.permute.xlu0 %1457
    %v1460 = vmul.f32 %v1442, %v1458
    %1462 = vrot.lane.b32.xlu0 %v1460, 32
    %v1463 = vpop.permute.xlu0 %1462
    %v1464 = vsel %vm177, %v1463, 0
    %1466 = vmatpush.msra.mxu0 0.0
    %1467 = vmatpush.msra.mxu0 0.0
    %1468 = vmatpush.msra.mxu0 0.0
    %1469 = vmatpush.msra.mxu0 0.0
    %1470 = vmatpush.msra.mxu0 0.0
    %1471 = vmatpush.msra.mxu0 0.0
    %1472 = vmatpush.msra.mxu0 0.0
    %1473 = vmatpush.msra.mxu0 0.0
    %1474 = vmatpush.msra.mxu0 0.0
    %1475 = vmatpush.msra.mxu0 0.0
    %1476 = vmatpush.msra.mxu0 0.0
    %1477 = vmatpush.msra.mxu0 0.0
    %1478 = vmatpush.msra.mxu0 %v62
    %1479 = vmatpush.msra.mxu0 %v61
    %1480 = vmatpush.msra.mxu0 %v60
    %1481 = vmatpush.msra.mxu0 %v59
    %1482 = vmatmul.f32.gmra.mxu0 %v1464
    %v1483 = vpop.f32.mrf.mxu0
    %v1484 = vadd.f32 %v1368, %v1483
    %1485 = vdwg.mxu0
    %v1486 = vadd.f32 %v1484, %v72
    %v1487 = vmul.f32 %v1486, 0.5
    %v1488 = vtanh.pop %v1487
    %v1489 = vmul.f32 %v1488, 0.5
    %v1490 = vadd.f32 %v1489, 0.5
    %v1491 = vtanh.pop %v1486
    %v1492 = vmul.f32 %v1490, %v1338
    %1494 = vrot.lane.b32.xlu0 %v1491, 64
    %v1495 = vpop.permute.xlu0 %1494
    %v1497 = vmul.f32 %v1490, %v1495
    %1499 = vrot.lane.b32.xlu0 %v1497, 32
    %v1500 = vpop.permute.xlu0 %1499
    %v1502 = vadd.f32 %v1492, %v1500
    %v1503 = vtanh.pop %v1502
    %1505 = vrot.lane.b32.xlu0 %v1503, 64
    %v1506 = vpop.permute.xlu0 %1505
    %v1508 = vmul.f32 %v1490, %v1506
    %1510 = vrot.lane.b32.xlu0 %v1508, 32
    %v1511 = vpop.permute.xlu0 %1510
    %v1512 = vsel %vm177, %v1511, 0
    %1514 = vmatpush.msra.mxu0 0.0
    %1515 = vmatpush.msra.mxu0 0.0
    %1516 = vmatpush.msra.mxu0 0.0
    %1517 = vmatpush.msra.mxu0 0.0
    %1518 = vmatpush.msra.mxu0 0.0
    %1519 = vmatpush.msra.mxu0 0.0
    %1520 = vmatpush.msra.mxu0 0.0
    %1521 = vmatpush.msra.mxu0 0.0
    %1522 = vmatpush.msra.mxu0 0.0
    %1523 = vmatpush.msra.mxu0 0.0
    %1524 = vmatpush.msra.mxu0 0.0
    %1525 = vmatpush.msra.mxu0 0.0
    %1526 = vmatpush.msra.mxu0 %v67
    %1527 = vmatpush.msra.mxu0 %v66
    %1528 = vmatpush.msra.mxu0 %v65
    %1529 = vmatpush.msra.mxu0 %v64
    %1530 = vmatmul.f32.gmra.mxu0 %v1512
    %v1531 = vpop.f32.mrf.mxu0
    %v1532 = vadd.f32 %v1436, %v1531
    %1533 = vdwg.mxu0
    %v1534 = vadd.f32 %v1532, %v77
    %v1535 = vmul.f32 %v1534, 0.5
    %v1536 = vtanh.pop %v1535
    %v1537 = vmul.f32 %v1536, 0.5
    %v1538 = vadd.f32 %v1537, 0.5
    %v1539 = vtanh.pop %v1534
    %v1540 = vmul.f32 %v1538, %v1406
    %1542 = vrot.lane.b32.xlu0 %v1539, 64
    %v1543 = vpop.permute.xlu0 %1542
    %v1545 = vmul.f32 %v1538, %v1543
    %1547 = vrot.lane.b32.xlu0 %v1545, 32
    %v1548 = vpop.permute.xlu0 %1547
    %v1550 = vadd.f32 %v1540, %v1548
    %v1551 = vtanh.pop %v1550
    %1553 = vrot.lane.b32.xlu0 %v1551, 64
    %v1554 = vpop.permute.xlu0 %1553
    %v1556 = vmul.f32 %v1538, %v1554
    %v1558 = vperm.slane %v79, 0
    %1559 = vrot.lane.b32.xlu0 %v1558, 96
    %v1560 = vpop.permute.xlu0 %1559
    %v1562 = vmul.f32 %v1556, %v1560
    %1564 = vrot.lane.b32.xlu0 %v1562, 32
    %v1565 = vpop.permute.xlu0 %1564
    %v1567 = vsel %vm177, %v1565, 0.0
    %1568 = vadd.xlane.f32.xlu0 %v1567
    %v1569 = vpop.xlane.xlu0 %1568
    %v1571 = vperm.slane %v80, 0
    %v1573 = vadd.f32 %v1569, %v1571
    %vm1574 = vcmask 7168
    %1575 = vst.msk [vmem:[%s7] sm:$0xff] %vm1574, %v1573
    // Predicated region
    $region34: #{tpu_custom_call.1} parent=1 // pred_check
      _
    $region35: #{tpu_custom_call.1} parent=1 // pred_check_branch
      %1577 = sbr.rel (0) target = $region37
    $region36: #{tpu_custom_call.1} parent=1 // pred_region
      _
    $region37: #{tpu_custom_call.1} parent=1 // pred_fallthru
      _
    // Predicated region
    $region38: #{tpu_custom_call.1} parent=1 // pred_check
      _
    $region39: #{tpu_custom_call.1} parent=1 // pred_check_branch
      %1579 = sbr.rel (0) target = $region41
    $region40: #{tpu_custom_call.1} parent=1 // pred_region
      _
    $region41: #{tpu_custom_call.1} parent=1 // pred_fallthru
      _
    %1580 = vsyncpa [#allocation4], 1

</llo_original>
